<compile_context>
chip_gen: v6e
topology: v6e:2x2x1
jax: 0.10.0
libtpu: 0.0.40
codegen_flags: <defaults>
</compile_context>

<pallas_src>
import math

import jax
import jax.numpy as jnp
from jax.experimental import pallas as pl

# Small, module-consistent shapes.
B, S, D, H, DFF = 2, 8, 32, 4, 64
DK = D // H
BS = B * S
EPS = 1e-6
NEG_INF = -1e9


# ----------------------------- reference math -------------------------------
def _layer_norm_ref(x, a, b):
    # torch.std(..., dim=-1) uses the unbiased (N-1) estimator by default.
    mean = jnp.mean(x, axis=-1, keepdims=True)
    var = jnp.sum((x - mean) ** 2, axis=-1, keepdims=True) / (x.shape[-1] - 1)
    return a * (x - mean) / (jnp.sqrt(var) + EPS) + b


# ----------------------------- kernel helpers --------------------------------
def _layer_norm_in_kernel(x, a, b):
    # One-pass statistics: var = (sum(x^2) - n*mean^2) / (n-1); same (std+eps)
    # formula as the PyTorch module.  Reciprocal goes to the EUP.
    n = x.shape[-1]
    s1 = jnp.sum(x, axis=-1, keepdims=True)
    s2 = jnp.sum(x * x, axis=-1, keepdims=True)
    mean = s1 * (1.0 / n)
    var = jnp.maximum(s2 - s1 * mean, 0.0) * (1.0 / (n - 1))
    std = jnp.sqrt(var)
    return a * (x - mean) * pl.reciprocal(std + EPS, approx=True) + b


def encoder_layer_kernel(x_ref, mask_ref, wqkv_ref, bqkv_ref, woh_ref,
                         w1_ref, b1_ref, w2_ref, vec_ref, o_ref):
    x = x_ref[...]                          # (BS, D)  all batches, row-folded
    masked_out = mask_ref[...] == 0         # (BS, BS) exact 0/1 float mask

    # Packed per-feature vectors: rows = [bo, b2, ln1a, ln1b, ln2a, ln2b].
    bo = vec_ref[0:1, :]
    b2 = vec_ref[1:2, :]
    ln1a, ln1b = vec_ref[2:3, :], vec_ref[3:4, :]
    ln2a, ln2b = vec_ref[4:5, :], vec_ref[5:6, :]

    # ---------- sublayer 0: pre-norm multi-head self-attention ----------
    xn = _layer_norm_in_kernel(x, ln1a, ln1b)
    # Fused Q|K|V projection: one (BS,D) @ (D,3D) matmul + one bias add.
    qkv = jnp.dot(xn, wqkv_ref[...],
                  preferred_element_type=jnp.float32) + bqkv_ref[...]

    def split_heads(base):
        # (H, BS, DK) head-batched view via static lane slices + major-dim stack.
        return jnp.stack(
            [qkv[:, base + h * DK: base + (h + 1) * DK] for h in range(H)],
            axis=0)

    qh = split_heads(0)          # (H, BS, DK)
    kh = split_heads(D)
    vh = split_heads(2 * D)

    # Batched scores over all heads: (H, BS, BS).
    s = jax.lax.dot_general(qh, kh, (((2,), (2,)), ((0,), (0,))),
                            preferred_element_type=jnp.float32)
    s = s * (1.0 / math.sqrt(DK))
    # Block-diagonal (per-batch) key mask; broadcasts over the head dim.
    s = jnp.where(masked_out[None, :, :], NEG_INF, s)
    # ONE softmax over all heads; denominator reciprocal on the EUP.
    s = s - jnp.max(s, axis=-1, keepdims=True)
    e = jnp.exp(s)
    p = e * pl.reciprocal(jnp.sum(e, axis=-1, keepdims=True), approx=True)

    ctx = jax.lax.dot_general(p, vh, (((2,), (1,)), ((0,), (0,))),
                              preferred_element_type=jnp.float32)   # (H,BS,DK)
    # Output projection as a per-head batched matmul, summed over heads
    # (avoids a lane-axis concatenate of the head contexts).
    outh = jax.lax.dot_general(ctx, woh_ref[...], (((2,), (1,)), ((0,), (0,))),
                               preferred_element_type=jnp.float32)  # (H,BS,D)
    attn = outh[0]
    for h in range(1, H):
        attn = attn + outh[h]
    attn = attn + bo
    # TODO(synk): nn.Dropout is identity in eval mode; omitted here.
    x1 = x + attn

    # ---------- sublayer 1: pre-norm position-wise feed-forward ----------
    xn2 = _layer_norm_in_kernel(x1, ln2a, ln2b)
    hdn = jnp.dot(xn2, w1_ref[...],
                  preferred_element_type=jnp.float32) + b1_ref[...]
    hdn = jnp.maximum(hdn, 0.0)
    ff = jnp.dot(hdn, w2_ref[...], preferred_element_type=jnp.float32) + b2

    o_ref[...] = (x1 + ff).astype(o_ref.dtype)


# ------------------------------ wrapper --------------------------------------
def encoder_layer(x, mask, params):
    (wq, bq, wk, bk, wv, bv, wo, bo, w1, b1, w2, b2,
     ln1a, ln1b, ln2a, ln2b) = params

    # Pack the 16 tiny parameter tensors into 7 slabs (wrapper-side, plain JAX).
    wqkv = jnp.concatenate([wq, wk, wv], axis=1)                     # (D, 3D)
    bqkv = jnp.concatenate([bq, bk, bv], axis=1)                     # (1, 3D)
    woh = wo.reshape(H, DK, D)                                       # per-head Wo
    vecs = jnp.concatenate([bo, b2, ln1a, ln1b, ln2a, ln2b], axis=0)  # (6, D)

    # Fold batch into rows for all dense matmuls.
    x2d = x.reshape(BS, D)
    # Combined (BS, BS) key mask: same-batch AND not-padded.  1 = attend.
    batch_ids = jnp.repeat(jnp.arange(B), S)
    same_batch = batch_ids[:, None] == batch_ids[None, :]
    key_keep = mask.reshape(BS) != 0
    big_mask = (same_batch & key_keep[None, :]).astype(jnp.float32)

    # Single program: no grid, whole arrays resident in VMEM (a few KB total).
    out2d = pl.pallas_call(
        encoder_layer_kernel,
        out_shape=jax.ShapeDtypeStruct((BS, D), jnp.float32),
    )(x2d, big_mask, wqkv, bqkv, woh, w1, b1, w2, vecs)
    return out2d.reshape(B, S, D)


# --------------------------- pure-JAX reference -------------------------------
def encoder_layer_ref(x, mask, params):
    """Mirrors the PyTorch forward (eval mode) exactly."""
    (wq, bq, wk, bk, wv, bv, wo, bo, w1, b1, w2, b2,
     ln1a, ln1b, ln2a, ln2b) = params
    out = []
    for b in range(B):
        xb, mb = x[b], mask[b, 0:1]
        xn = _layer_norm_ref(xb, ln1a, ln1b)
        q, k, v = xn @ wq + bq, xn @ wk + bk, xn @ wv + bv
        heads = []
        for h in range(H):
            sl = slice(h * DK, (h + 1) * DK)
            s = (q[:, sl] @ k[:, sl].T) / math.sqrt(DK)
            s = jnp.where(mb == 0, NEG_INF, s)
            p = jax.nn.softmax(s, axis=-1)
            heads.append(p @ v[:, sl])
        x1 = xb + (jnp.concatenate(heads, -1) @ wo + bo)
        xn2 = _layer_norm_ref(x1, ln2a, ln2b)
        ff = jnp.maximum(xn2 @ w1 + b1, 0.0) @ w2 + b2
        out.append(x1 + ff)
    return jnp.stack(out)


if __name__ == "__main__":
    key = jax.random.PRNGKey(0)
    ks = jax.random.split(key, 16)

    def w(k, shape, scale=0.05):
        return (scale * jax.random.normal(k, shape)).astype(jnp.float32)

    params = [
        w(ks[0], (D, D)),  w(ks[1], (1, D), 0.01),      # Wq, bq
        w(ks[2], (D, D)),  w(ks[3], (1, D), 0.01),      # Wk, bk
        w(ks[4], (D, D)),  w(ks[5], (1, D), 0.01),      # Wv, bv
        w(ks[6], (D, D)),  w(ks[7], (1, D), 0.01),      # Wo, bo
        w(ks[8], (D, DFF)), w(ks[9], (1, DFF), 0.01),   # FFN W1, b1
        w(ks[10], (DFF, D)), w(ks[11], (1, D), 0.01),   # FFN W2, b2
        jnp.ones((1, D), jnp.float32), jnp.zeros((1, D), jnp.float32),  # LN1 a,b
        jnp.ones((1, D), jnp.float32), jnp.zeros((1, D), jnp.float32),  # LN2 a,b
    ]

    x = jax.random.normal(ks[12], (B, S, D), dtype=jnp.float32)
    mask = jnp.ones((B, 1, S), dtype=jnp.float32)
    mask = mask.at[1, 0, S - 2:].set(0.0)   # mask out last two keys of batch 1

    out = encoder_layer(x, mask, params)
    out = jax.block_until_ready(out)

    ref = encoder_layer_ref(x, mask, params)
    assert out.shape == (B, S, D)
    # approx-reciprocal (EUP) softmax/LayerNorm path loosens tolerance vs 1e-4.
    assert jnp.allclose(out, ref, atol=3e-3, rtol=3e-3), "mismatch vs JAX reference"

    print("KERNEL_OK")
</pallas_src>

<mosaic_0001>
module attributes {stable_mosaic.version = 11 : i64} {
  func.func @encoder_layer_kernel(%arg0: memref<16x32xf32, #tpu.memory_space<vmem>>, %arg1: memref<16x16xf32, #tpu.memory_space<vmem>>, %arg2: memref<32x96xf32, #tpu.memory_space<vmem>>, %arg3: memref<1x96xf32, #tpu.memory_space<vmem>>, %arg4: memref<4x8x32xf32, #tpu.memory_space<vmem>>, %arg5: memref<32x64xf32, #tpu.memory_space<vmem>>, %arg6: memref<1x64xf32, #tpu.memory_space<vmem>>, %arg7: memref<64x32xf32, #tpu.memory_space<vmem>>, %arg8: memref<6x32xf32, #tpu.memory_space<vmem>>, %arg9: memref<16x32xf32, #tpu.memory_space<vmem>>) attributes {dimension_semantics = [], scalar_prefetch = 0 : i64, scratch_operands = 0 : i64, tpu.core_type = #tpu.core_type<tc>} {
    %c0 = arith.constant 0 : index
    %c0_0 = arith.constant 0 : index
    %0 = vector.load %arg0[%c0, %c0_0] : memref<16x32xf32, #tpu.memory_space<vmem>>, vector<16x32xf32>
    %c0_1 = arith.constant 0 : index
    %c0_2 = arith.constant 0 : index
    %1 = vector.load %arg1[%c0_1, %c0_2] : memref<16x16xf32, #tpu.memory_space<vmem>>, vector<16x16xf32>
    %cst = arith.constant 0.000000e+00 : f32
    %2 = vector.broadcast %cst : f32 to vector<16x16xf32>
    %3 = arith.cmpf oeq, %1, %2 : vector<16x16xf32>
    %c0_3 = arith.constant 0 : index
    %c0_4 = arith.constant 0 : index
    %4 = vector.load %arg8[%c0_3, %c0_4] : memref<6x32xf32, #tpu.memory_space<vmem>>, vector<1x32xf32>
    %c1 = arith.constant 1 : index
    %c0_5 = arith.constant 0 : index
    %5 = vector.load %arg8[%c1, %c0_5] : memref<6x32xf32, #tpu.memory_space<vmem>>, vector<1x32xf32>
    %c2 = arith.constant 2 : index
    %c0_6 = arith.constant 0 : index
    %6 = vector.load %arg8[%c2, %c0_6] : memref<6x32xf32, #tpu.memory_space<vmem>>, vector<1x32xf32>
    %c3 = arith.constant 3 : index
    %c0_7 = arith.constant 0 : index
    %7 = vector.load %arg8[%c3, %c0_7] : memref<6x32xf32, #tpu.memory_space<vmem>>, vector<1x32xf32>
    %c4 = arith.constant 4 : index
    %c0_8 = arith.constant 0 : index
    %8 = vector.load %arg8[%c4, %c0_8] : memref<6x32xf32, #tpu.memory_space<vmem>>, vector<1x32xf32>
    %c5 = arith.constant 5 : index
    %c0_9 = arith.constant 0 : index
    %9 = vector.load %arg8[%c5, %c0_9] : memref<6x32xf32, #tpu.memory_space<vmem>>, vector<1x32xf32>
    %cst_10 = arith.constant dense<0.000000e+00> : vector<16xf32>
    %10 = vector.multi_reduction <add>, %0, %cst_10 [1] : vector<16x32xf32> to vector<16xf32>
    %11 = vector.shape_cast %10 : vector<16xf32> to vector<16x1xf32>
    %12 = arith.mulf %0, %0 : vector<16x32xf32>
    %cst_11 = arith.constant dense<0.000000e+00> : vector<16xf32>
    %13 = vector.multi_reduction <add>, %12, %cst_11 [1] : vector<16x32xf32> to vector<16xf32>
    %14 = vector.shape_cast %13 : vector<16xf32> to vector<16x1xf32>
    %cst_12 = arith.constant 3.125000e-02 : f32
    %15 = vector.broadcast %cst_12 : f32 to vector<16x1xf32>
    %16 = arith.mulf %11, %15 : vector<16x1xf32>
    %17 = arith.mulf %11, %16 : vector<16x1xf32>
    %18 = arith.subf %14, %17 : vector<16x1xf32>
    %cst_13 = arith.constant 0.000000e+00 : f32
    %19 = vector.broadcast %cst_13 : f32 to vector<16x1xf32>
    %20 = arith.maximumf %18, %19 : vector<16x1xf32>
    %cst_14 = arith.constant 0.0322580636 : f32
    %21 = vector.broadcast %cst_14 : f32 to vector<16x1xf32>
    %22 = arith.mulf %20, %21 : vector<16x1xf32>
    %23 = math.sqrt %22 : vector<16x1xf32>
    %24 = vector.broadcast %16 : vector<16x1xf32> to vector<16x32xf32>
    %25 = arith.subf %0, %24 : vector<16x32xf32>
    %26 = vector.broadcast %6 : vector<1x32xf32> to vector<16x32xf32>
    %27 = arith.mulf %26, %25 : vector<16x32xf32>
    %cst_15 = arith.constant 9.99999997E-7 : f32
    %28 = vector.broadcast %cst_15 : f32 to vector<16x1xf32>
    %29 = arith.addf %23, %28 : vector<16x1xf32>
    %30 = tpu.reciprocal %29 {approx = true} : vector<16x1xf32> -> vector<16x1xf32>
    %31 = vector.broadcast %30 : vector<16x1xf32> to vector<16x32xf32>
    %32 = arith.mulf %27, %31 : vector<16x32xf32>
    %33 = vector.broadcast %7 : vector<1x32xf32> to vector<16x32xf32>
    %34 = arith.addf %32, %33 : vector<16x32xf32>
    %c0_16 = arith.constant 0 : index
    %c0_17 = arith.constant 0 : index
    %35 = vector.load %arg2[%c0_16, %c0_17] : memref<32x96xf32, #tpu.memory_space<vmem>>, vector<32x96xf32>
    %cst_18 = arith.constant dense<0.000000e+00> : vector<16x96xf32>
    %36 = tpu.matmul %34, %35, %cst_18 {dimension_numbers = #tpu.dot_dimension_numbers<[1], [0], [0], [1], [0, 0, 1, 1], [], []>} : vector<16x32xf32>, vector<32x96xf32>, vector<16x96xf32> -> vector<16x96xf32>
    %c0_19 = arith.constant 0 : index
    %c0_20 = arith.constant 0 : index
    %37 = vector.load %arg3[%c0_19, %c0_20] : memref<1x96xf32, #tpu.memory_space<vmem>>, vector<1x96xf32>
    %38 = vector.broadcast %37 : vector<1x96xf32> to vector<16x96xf32>
    %39 = arith.addf %36, %38 : vector<16x96xf32>
    %40 = vector.extract_strided_slice %39 {offsets = [0, 0], sizes = [16, 8], strides = [1, 1]} : vector<16x96xf32> to vector<16x8xf32>
    %41 = vector.extract_strided_slice %39 {offsets = [0, 8], sizes = [16, 8], strides = [1, 1]} : vector<16x96xf32> to vector<16x8xf32>
    %42 = vector.extract_strided_slice %39 {offsets = [0, 16], sizes = [16, 8], strides = [1, 1]} : vector<16x96xf32> to vector<16x8xf32>
    %43 = vector.extract_strided_slice %39 {offsets = [0, 24], sizes = [16, 8], strides = [1, 1]} : vector<16x96xf32> to vector<16x8xf32>
    %44 = vector.shape_cast %40 : vector<16x8xf32> to vector<1x16x8xf32>
    %45 = vector.shape_cast %41 : vector<16x8xf32> to vector<1x16x8xf32>
    %46 = vector.shape_cast %42 : vector<16x8xf32> to vector<1x16x8xf32>
    %47 = vector.shape_cast %43 : vector<16x8xf32> to vector<1x16x8xf32>
    %48 = tpu.concatenate %44, %45, %46, %47 in 0 : vector<1x16x8xf32>, vector<1x16x8xf32>, vector<1x16x8xf32>, vector<1x16x8xf32> -> vector<4x16x8xf32>
    %49 = vector.extract_strided_slice %39 {offsets = [0, 32], sizes = [16, 8], strides = [1, 1]} : vector<16x96xf32> to vector<16x8xf32>
    %50 = vector.extract_strided_slice %39 {offsets = [0, 40], sizes = [16, 8], strides = [1, 1]} : vector<16x96xf32> to vector<16x8xf32>
    %51 = vector.extract_strided_slice %39 {offsets = [0, 48], sizes = [16, 8], strides = [1, 1]} : vector<16x96xf32> to vector<16x8xf32>
    %52 = vector.extract_strided_slice %39 {offsets = [0, 56], sizes = [16, 8], strides = [1, 1]} : vector<16x96xf32> to vector<16x8xf32>
    %53 = vector.shape_cast %49 : vector<16x8xf32> to vector<1x16x8xf32>
    %54 = vector.shape_cast %50 : vector<16x8xf32> to vector<1x16x8xf32>
    %55 = vector.shape_cast %51 : vector<16x8xf32> to vector<1x16x8xf32>
    %56 = vector.shape_cast %52 : vector<16x8xf32> to vector<1x16x8xf32>
    %57 = tpu.concatenate %53, %54, %55, %56 in 0 : vector<1x16x8xf32>, vector<1x16x8xf32>, vector<1x16x8xf32>, vector<1x16x8xf32> -> vector<4x16x8xf32>
    %58 = vector.extract_strided_slice %39 {offsets = [0, 64], sizes = [16, 8], strides = [1, 1]} : vector<16x96xf32> to vector<16x8xf32>
    %59 = vector.extract_strided_slice %39 {offsets = [0, 72], sizes = [16, 8], strides = [1, 1]} : vector<16x96xf32> to vector<16x8xf32>
    %60 = vector.extract_strided_slice %39 {offsets = [0, 80], sizes = [16, 8], strides = [1, 1]} : vector<16x96xf32> to vector<16x8xf32>
    %61 = vector.extract_strided_slice %39 {offsets = [0, 88], sizes = [16, 8], strides = [1, 1]} : vector<16x96xf32> to vector<16x8xf32>
    %62 = vector.shape_cast %58 : vector<16x8xf32> to vector<1x16x8xf32>
    %63 = vector.shape_cast %59 : vector<16x8xf32> to vector<1x16x8xf32>
    %64 = vector.shape_cast %60 : vector<16x8xf32> to vector<1x16x8xf32>
    %65 = vector.shape_cast %61 : vector<16x8xf32> to vector<1x16x8xf32>
    %66 = tpu.concatenate %62, %63, %64, %65 in 0 : vector<1x16x8xf32>, vector<1x16x8xf32>, vector<1x16x8xf32>, vector<1x16x8xf32> -> vector<4x16x8xf32>
    %cst_21 = arith.constant dense<0.000000e+00> : vector<4x16x16xf32>
    %67 = tpu.matmul %48, %57, %cst_21 {dimension_numbers = #tpu.dot_dimension_numbers<[2], [2], [1], [1], [0, 0, 0, 1, 1, 1], [0], [0]>} : vector<4x16x8xf32>, vector<4x16x8xf32>, vector<4x16x16xf32> -> vector<4x16x16xf32>
    %cst_22 = arith.constant 0.353553385 : f32
    %68 = vector.broadcast %cst_22 : f32 to vector<4x16x16xf32>
    %69 = arith.mulf %67, %68 : vector<4x16x16xf32>
    %70 = vector.shape_cast %3 : vector<16x16xi1> to vector<1x16x16xi1>
    %cst_23 = arith.constant -1.000000e+09 : f32
    %71 = vector.shape_cast %70 : vector<1x16x16xi1> to vector<1x16x16xi1>
    %72 = vector.broadcast %71 : vector<1x16x16xi1> to vector<4x16x16xi1>
    %73 = vector.broadcast %cst_23 : f32 to vector<4x16x16xf32>
    %74 = arith.select %72, %73, %69 : vector<4x16x16xi1>, vector<4x16x16xf32>
    %cst_24 = arith.constant dense<0xFF800000> : vector<4x16xf32>
    %75 = vector.multi_reduction <maximumf>, %74, %cst_24 [2] : vector<4x16x16xf32> to vector<4x16xf32>
    %76 = vector.shape_cast %75 : vector<4x16xf32> to vector<4x16x1xf32>
    %77 = vector.broadcast %76 : vector<4x16x1xf32> to vector<4x16x16xf32>
    %78 = arith.subf %74, %77 : vector<4x16x16xf32>
    %79 = math.exp %78 : vector<4x16x16xf32>
    %cst_25 = arith.constant dense<0.000000e+00> : vector<4x16xf32>
    %80 = vector.multi_reduction <add>, %79, %cst_25 [2] : vector<4x16x16xf32> to vector<4x16xf32>
    %81 = vector.shape_cast %80 : vector<4x16xf32> to vector<4x16x1xf32>
    %82 = tpu.reciprocal %81 {approx = true} : vector<4x16x1xf32> -> vector<4x16x1xf32>
    %83 = vector.broadcast %82 : vector<4x16x1xf32> to vector<4x16x16xf32>
    %84 = arith.mulf %79, %83 : vector<4x16x16xf32>
    %cst_26 = arith.constant dense<0.000000e+00> : vector<4x16x8xf32>
    %85 = tpu.matmul %84, %66, %cst_26 {dimension_numbers = #tpu.dot_dimension_numbers<[2], [1], [1], [2], [0, 0, 0, 1, 1, 2], [0], [0]>} : vector<4x16x16xf32>, vector<4x16x8xf32>, vector<4x16x8xf32> -> vector<4x16x8xf32>
    %c0_27 = arith.constant 0 : index
    %c0_28 = arith.constant 0 : index
    %c0_29 = arith.constant 0 : index
    %86 = vector.load %arg4[%c0_27, %c0_28, %c0_29] : memref<4x8x32xf32, #tpu.memory_space<vmem>>, vector<4x8x32xf32>
    %cst_30 = arith.constant dense<0.000000e+00> : vector<4x16x32xf32>
    %87 = tpu.matmul %85, %86, %cst_30 {dimension_numbers = #tpu.dot_dimension_numbers<[2], [1], [1], [2], [0, 0, 0, 1, 1, 2], [0], [0]>} : vector<4x16x8xf32>, vector<4x8x32xf32>, vector<4x16x32xf32> -> vector<4x16x32xf32>
    %88 = vector.extract_strided_slice %87 {offsets = [0, 0, 0], sizes = [1, 16, 32], strides = [1, 1, 1]} : vector<4x16x32xf32> to vector<1x16x32xf32>
    %89 = vector.shape_cast %88 : vector<1x16x32xf32> to vector<16x32xf32>
    %90 = vector.extract_strided_slice %87 {offsets = [1, 0, 0], sizes = [1, 16, 32], strides = [1, 1, 1]} : vector<4x16x32xf32> to vector<1x16x32xf32>
    %91 = vector.shape_cast %90 : vector<1x16x32xf32> to vector<16x32xf32>
    %92 = arith.addf %89, %91 : vector<16x32xf32>
    %93 = vector.extract_strided_slice %87 {offsets = [2, 0, 0], sizes = [1, 16, 32], strides = [1, 1, 1]} : vector<4x16x32xf32> to vector<1x16x32xf32>
    %94 = vector.shape_cast %93 : vector<1x16x32xf32> to vector<16x32xf32>
    %95 = arith.addf %92, %94 : vector<16x32xf32>
    %96 = vector.extract_strided_slice %87 {offsets = [3, 0, 0], sizes = [1, 16, 32], strides = [1, 1, 1]} : vector<4x16x32xf32> to vector<1x16x32xf32>
    %97 = vector.shape_cast %96 : vector<1x16x32xf32> to vector<16x32xf32>
    %98 = arith.addf %95, %97 : vector<16x32xf32>
    %99 = vector.broadcast %4 : vector<1x32xf32> to vector<16x32xf32>
    %100 = arith.addf %98, %99 : vector<16x32xf32>
    %101 = arith.addf %0, %100 : vector<16x32xf32>
    %cst_31 = arith.constant dense<0.000000e+00> : vector<16xf32>
    %102 = vector.multi_reduction <add>, %101, %cst_31 [1] : vector<16x32xf32> to vector<16xf32>
    %103 = vector.shape_cast %102 : vector<16xf32> to vector<16x1xf32>
    %104 = arith.mulf %101, %101 : vector<16x32xf32>
    %cst_32 = arith.constant dense<0.000000e+00> : vector<16xf32>
    %105 = vector.multi_reduction <add>, %104, %cst_32 [1] : vector<16x32xf32> to vector<16xf32>
    %106 = vector.shape_cast %105 : vector<16xf32> to vector<16x1xf32>
    %cst_33 = arith.constant 3.125000e-02 : f32
    %107 = vector.broadcast %cst_33 : f32 to vector<16x1xf32>
    %108 = arith.mulf %103, %107 : vector<16x1xf32>
    %109 = arith.mulf %103, %108 : vector<16x1xf32>
    %110 = arith.subf %106, %109 : vector<16x1xf32>
    %cst_34 = arith.constant 0.000000e+00 : f32
    %111 = vector.broadcast %cst_34 : f32 to vector<16x1xf32>
    %112 = arith.maximumf %110, %111 : vector<16x1xf32>
    %cst_35 = arith.constant 0.0322580636 : f32
    %113 = vector.broadcast %cst_35 : f32 to vector<16x1xf32>
    %114 = arith.mulf %112, %113 : vector<16x1xf32>
    %115 = math.sqrt %114 : vector<16x1xf32>
    %116 = vector.broadcast %108 : vector<16x1xf32> to vector<16x32xf32>
    %117 = arith.subf %101, %116 : vector<16x32xf32>
    %118 = vector.broadcast %8 : vector<1x32xf32> to vector<16x32xf32>
    %119 = arith.mulf %118, %117 : vector<16x32xf32>
    %cst_36 = arith.constant 9.99999997E-7 : f32
    %120 = vector.broadcast %cst_36 : f32 to vector<16x1xf32>
    %121 = arith.addf %115, %120 : vector<16x1xf32>
    %122 = tpu.reciprocal %121 {approx = true} : vector<16x1xf32> -> vector<16x1xf32>
    %123 = vector.broadcast %122 : vector<16x1xf32> to vector<16x32xf32>
    %124 = arith.mulf %119, %123 : vector<16x32xf32>
    %125 = vector.broadcast %9 : vector<1x32xf32> to vector<16x32xf32>
    %126 = arith.addf %124, %125 : vector<16x32xf32>
    %c0_37 = arith.constant 0 : index
    %c0_38 = arith.constant 0 : index
    %127 = vector.load %arg5[%c0_37, %c0_38] : memref<32x64xf32, #tpu.memory_space<vmem>>, vector<32x64xf32>
    %cst_39 = arith.constant dense<0.000000e+00> : vector<16x64xf32>
    %128 = tpu.matmul %126, %127, %cst_39 {dimension_numbers = #tpu.dot_dimension_numbers<[1], [0], [0], [1], [0, 0, 1, 1], [], []>} : vector<16x32xf32>, vector<32x64xf32>, vector<16x64xf32> -> vector<16x64xf32>
    %c0_40 = arith.constant 0 : index
    %c0_41 = arith.constant 0 : index
    %129 = vector.load %arg6[%c0_40, %c0_41] : memref<1x64xf32, #tpu.memory_space<vmem>>, vector<1x64xf32>
    %130 = vector.broadcast %129 : vector<1x64xf32> to vector<16x64xf32>
    %131 = arith.addf %128, %130 : vector<16x64xf32>
    %cst_42 = arith.constant 0.000000e+00 : f32
    %132 = vector.broadcast %cst_42 : f32 to vector<16x64xf32>
    %133 = arith.maximumf %131, %132 : vector<16x64xf32>
    %c0_43 = arith.constant 0 : index
    %c0_44 = arith.constant 0 : index
    %134 = vector.load %arg7[%c0_43, %c0_44] : memref<64x32xf32, #tpu.memory_space<vmem>>, vector<64x32xf32>
    %cst_45 = arith.constant dense<0.000000e+00> : vector<16x32xf32>
    %135 = tpu.matmul %133, %134, %cst_45 {dimension_numbers = #tpu.dot_dimension_numbers<[1], [0], [0], [1], [0, 0, 1, 1], [], []>} : vector<16x64xf32>, vector<64x32xf32>, vector<16x32xf32> -> vector<16x32xf32>
    %136 = vector.broadcast %5 : vector<1x32xf32> to vector<16x32xf32>
    %137 = arith.addf %135, %136 : vector<16x32xf32>
    %138 = arith.addf %101, %137 : vector<16x32xf32>
    %c0_46 = arith.constant 0 : index
    %c0_47 = arith.constant 0 : index
    %139 = vector.load %arg9[%c0_46, %c0_47] : memref<16x32xf32, #tpu.memory_space<vmem>>, vector<16x32xf32>
    tpu.vector_store %arg9[%c0_46, %c0_47], %138 {strides = array<i32>} : memref<16x32xf32, #tpu.memory_space<vmem>>, vector<16x32xf32>,
    return
  }
}

</mosaic_0001>

<llo_original>
// kernel: tpu_custom_call.1
$region0: #{tpu_custom_call.1}
  #allocation0 [shape = 'u32[]', space=smem, size = 0x4, offset = 0x4, fixed_abs, tag = 'smem constant byte address 0x4 - core index']
  #allocation1 [shape = 'u32[144,128]{1,0:T(1,128)}', space=vmem, size = 0x12000, scoped, tag = 'internal scratch']
  %s0 = inlined_call_operand.hbm [shape: f32[16,32], index: 0, kind: input, shape index: {}]
  %s1 = inlined_call_operand.hbm [shape: f32[16,16], index: 1, kind: input, shape index: {}]
  %s2 = inlined_call_operand.vmem [shape: f32[32,96], index: 2, kind: input, shape index: {}]
  %s3 = inlined_call_operand.vmem [shape: f32[1,96], index: 3, kind: input, shape index: {}]
  %s4 = inlined_call_operand.vmem [shape: f32[4,8,32], index: 4, kind: input, shape index: {}]
  %s5 = inlined_call_operand.vmem [shape: f32[32,64], index: 5, kind: input, shape index: {}]
  %s6 = inlined_call_operand.vmem [shape: f32[1,64], index: 6, kind: input, shape index: {}]
  %s7 = inlined_call_operand.vmem [shape: f32[64,32], index: 7, kind: input, shape index: {}]
  %s8 = inlined_call_operand.vmem [shape: f32[6,32], index: 8, kind: input, shape index: {}]
  %s9 = inlined_call_operand.hbm [shape: f32[16,32], index: 9, kind: output, shape index: {}]
  %s10 = sld [smem:[#allocation0]]
  $region54: #{tpu_custom_call.1} parent=0
    _
  %s12 = ssub.s32 1, %s10
  %s13 = scalar_select 0, %s12, %s10
  $region1: #{tpu_custom_call.1} parent=0
    #allocation2 [shape = 'u8[8192]{0}', space=vmem, size = 0x2000, scoped, tag = 'input window, operand 0, single buffered']
    #allocation3 [shape = 's32[1]{0}', space=sflag, size = 0x4, scoped, tag = 'scoped memory for tpu_custom_call.1']
    #allocation4 [shape = 's32[1]{0}', space=sflag, size = 0x4, scoped, tag = 'scoped memory for tpu_custom_call.1']
    #allocation5 [shape = 'u8[8192]{0}', space=vmem, size = 0x2000, scoped, tag = 'input window, operand 1, single buffered']
    #allocation6 [shape = 's32[1]{0}', space=sflag, size = 0x4, scoped, tag = 'scoped memory for tpu_custom_call.1']
    #allocation7 [shape = 'u8[8192]{0}', space=vmem, size = 0x2000, scoped, tag = 'output window, operand 0, single buffered']
    %14 = vsyncpa [#allocation3], 0
    %15 = vsyncpa [#allocation6], 0
    %16 = vsyncpa [#allocation4], 0
    // Predicated region
    $region2: #{tpu_custom_call.1} parent=1 // pred_check
      _
    $region3: #{tpu_custom_call.1} parent=1 // pred_check_branch
      %18 = sbr.rel (0) target = $region5
    $region4: #{tpu_custom_call.1} parent=1 // pred_region
      %s20 = ssub.s32 256, 256
      %21 = vsyncadd [#allocation3], %s20
      %s22 = sshll.u32 [#allocation2], 4
      %s23 = int_to_ptr.vmem [resolvable:$true] %s22
      %28 = dma.hbm_to_vmem [thread:$0]  %s0, 256, %s23, [#allocation3], 128, 128, 8
    $region5: #{tpu_custom_call.1} parent=1 // pred_fallthru
      _
    // Predicated region
    $region6: #{tpu_custom_call.1} parent=1 // pred_check
      _
    $region7: #{tpu_custom_call.1} parent=1 // pred_check_branch
      %30 = sbr.rel (0) target = $region9
    $region8: #{tpu_custom_call.1} parent=1 // pred_region
      %s32 = ssub.s32 256, 256
      %33 = vsyncadd [#allocation6], %s32
      %s34 = sshll.u32 [#allocation5], 4
      %s35 = int_to_ptr.vmem [resolvable:$true] %s34
      %40 = dma.hbm_to_vmem [thread:$0]  %s1, 256, %s35, [#allocation6], 128, 128, 8
    $region9: #{tpu_custom_call.1} parent=1 // pred_fallthru
      _
    // Predicated region
    $region10: #{tpu_custom_call.1} parent=1 // pred_check
      _
    $region11: #{tpu_custom_call.1} parent=1 // pred_check_branch
      %42 = sbr.rel (0) target = $region13
    $region12: #{tpu_custom_call.1} parent=1 // pred_region
      _
    $region13: #{tpu_custom_call.1} parent=1 // pred_fallthru
      _
    // Predicated region
    $region14: #{tpu_custom_call.1} parent=1 // pred_check
      _
    $region15: #{tpu_custom_call.1} parent=1 // pred_check_branch
      %44 = sbr.rel (0) target = $region17
    $region16: #{tpu_custom_call.1} parent=1 // pred_region
      _
    $region17: #{tpu_custom_call.1} parent=1 // pred_fallthru
      _
    // Predicated region
    $region18: #{tpu_custom_call.1} parent=1 // pred_check
      _
    $region19: #{tpu_custom_call.1} parent=1 // pred_check_branch
      %46 = sbr.rel (0) target = $region21
    $region20: #{tpu_custom_call.1} parent=1 // pred_region
      _
    $region21: #{tpu_custom_call.1} parent=1 // pred_fallthru
      _
    // Predicated region
    $region22: #{tpu_custom_call.1} parent=1 // pred_check
      _
    $region23: #{tpu_custom_call.1} parent=1 // pred_check_branch
      %48 = sbr.rel (0) target = $region25
    $region24: #{tpu_custom_call.1} parent=1 // pred_region
      _
    $region25: #{tpu_custom_call.1} parent=1 // pred_fallthru
      _
    // Predicated region
    $region26: #{tpu_custom_call.1} parent=1 // pred_check
      _
    $region27: #{tpu_custom_call.1} parent=1 // pred_check_branch
      %50 = sbr.rel (0) target = $region29
    $region28: #{tpu_custom_call.1} parent=1 // pred_region
      _
    $region29: #{tpu_custom_call.1} parent=1 // pred_fallthru
      _
    // Predicated region
    $region30: #{tpu_custom_call.1} parent=1 // pred_check
      _
    $region31: #{tpu_custom_call.1} parent=1 // pred_check_branch
      %52 = sbr.rel (0) target = $region33
    $region32: #{tpu_custom_call.1} parent=1 // pred_region
      _
    $region33: #{tpu_custom_call.1} parent=1 // pred_fallthru
      _
    // Predicated region
    $region34: #{tpu_custom_call.1} parent=1 // pred_check
      _
    $region35: #{tpu_custom_call.1} parent=1 // pred_check_branch
      %54 = sbr.rel (0) target = $region37
    $region36: #{tpu_custom_call.1} parent=1 // pred_region
      _
    $region37: #{tpu_custom_call.1} parent=1 // pred_fallthru
      _
    // Predicated region
    $region38: #{tpu_custom_call.1} parent=1 // pred_check
      _
    $region39: #{tpu_custom_call.1} parent=1 // pred_check_branch
      %56 = sbr.rel (0) target = $region41
    $region40: #{tpu_custom_call.1} parent=1 // pred_region
      %57 = dma.done [#allocation3], 256
    $region41: #{tpu_custom_call.1} parent=1 // pred_fallthru
      _
    // Predicated region
    $region42: #{tpu_custom_call.1} parent=1 // pred_check
      _
    $region43: #{tpu_custom_call.1} parent=1 // pred_check_branch
      %59 = sbr.rel (0) target = $region45
    $region44: #{tpu_custom_call.1} parent=1 // pred_region
      %60 = dma.done [#allocation6], 256
    $region45: #{tpu_custom_call.1} parent=1 // pred_fallthru
      _
    %v61 = vld [vmem:[#allocation2] sm:$0xff]
    %v62 = vld [vmem:[#allocation2 + $0x8] sm:$0xff]
    %v63 = vld [vmem:[#allocation5] sm:$0xff]
    %v64 = vld [vmem:[#allocation5 + $0x8] sm:$0xff]
    %vm65 = vcmp.eq.f32.partialorder %v63, 0.0
    %vm66 = vcmp.eq.f32.partialorder %v64, 0.0
    %v67 = vld [vmem:[%s8] sm:$0x1]
    %v68 = vld [vmem:[%s8 + $0x1] sm:$0x1]
    %v69 = vld [vmem:[%s8 + $0x2] sm:$0x1]
    %v70 = vld [vmem:[%s8 + $0x3] sm:$0x1]
    %v71 = vld [vmem:[%s8 + $0x4] sm:$0x1]
    %v72 = vld [vmem:[%s8 + $0x5] sm:$0x1]
    %vm73 = vcmask 261120
    %v74 = vsel %vm73, %v61, 0.0
    %75 = vadd.xlane.f32.xlu0 %v74
    %v76 = vpop.xlane.xlu0 %75
    %v77 = vsel %vm73, %v62, 0.0
    %78 = vadd.xlane.f32.xlu0 %v77
    %v79 = vpop.xlane.xlu0 %78
    %v80 = vmul.f32 %v61, %v61
    %v81 = vmul.f32 %v62, %v62
    %v82 = vsel %vm73, %v80, 0.0
    %83 = vadd.xlane.f32.xlu0 %v82
    %v84 = vpop.xlane.xlu0 %83
    %v85 = vsel %vm73, %v81, 0.0
    %86 = vadd.xlane.f32.xlu0 %v85
    %v87 = vpop.xlane.xlu0 %86
    %v88 = vmul.f32 %v76, 0.03125
    %v89 = vmul.f32 %v79, 0.03125
    %v90 = vmul.f32 %v76, %v88
    %v91 = vmul.f32 %v79, %v89
    %v92 = vsub.f32 %v84, %v90
    %v93 = vsub.f32 %v87, %v91
    %v94 = vmax.f32 %v92, 0.0
    %v95 = vmax.f32 %v93, 0.0
    %v96 = vmul.f32 %v94, 0.032258064
    %v97 = vmul.f32 %v95, 0.032258064
    %v98 = vrsqrt.pop %v96
    %v99 = vmul.f32 %v96, %v98
    %vm100 = vcmp.eq.f32.partialorder %v96, inf
    %v101 = vsel %vm100, %v96, %v99
    %vm102 = vcmp.eq.f32.partialorder %v96, 0.0
    %v103 = vand.u32 %v96, 2147483648
    %v104 = vsel %vm102, %v103, %v101
    %v105 = vrsqrt.pop %v97
    %v106 = vmul.f32 %v97, %v105
    %vm107 = vcmp.eq.f32.partialorder %v97, inf
    %v108 = vsel %vm107, %v97, %v106
    %vm109 = vcmp.eq.f32.partialorder %v97, 0.0
    %v110 = vand.u32 %v97, 2147483648
    %v111 = vsel %vm109, %v110, %v108
    %v112 = vsub.f32 %v61, %v88
    %v113 = vsub.f32 %v62, %v89
    %v114 = vlaneseq
    %v115 = vshrl.u32 %v114, 7
    %v116 = vsub.s32 0, %v115
    %v117 = vrot.slane %v69, %v116
    %v118 = vmul.f32 %v117, %v112
    %v119 = vmul.f32 %v117, %v113
    %v120 = vadd.f32 %v104, 1e-06
    %v121 = vadd.f32 %v111, 1e-06
    %v122 = vrcp.pop %v120
    %v123 = vrcp.pop %v121
    %v124 = vmul.f32 %v118, %v122
    %v125 = vmul.f32 %v119, %v123
    %v126 = vlaneseq
    %v127 = vshrl.u32 %v126, 7
    %v128 = vsub.s32 0, %v127
    %v129 = vrot.slane %v70, %v128
    %v130 = vadd.f32 %v124, %v129
    %v131 = vadd.f32 %v125, %v129
    %v132 = vld [vmem:[%s2] sm:$0xff]
    %v133 = vld [vmem:[%s2 + $0x8] sm:$0xff]
    %v134 = vld [vmem:[%s2 + $0x10] sm:$0xff]
    %v135 = vld [vmem:[%s2 + $0x18] sm:$0xff]
    %v136 = vld [vmem:[%s3] sm:$0x1]
    %v138 = vlaneseq
    %v139 = vshrl.u32 %v138, 7
    %v140 = vsub.s32 0, %v139
    %v141 = vrot.slane %v136, %v140
    %v144 = vsel %vm73, %v130, 0
    %v147 = vsel %vm73, %v131, 0
    %149 = vmatprep.subr.mxu0 0.0
    %150 = vmatpush1.msra.mxu0 0.0
    %151 = vmatprep.subr.mxu0 0.0
    %152 = vmatpush1.msra.mxu0 0.0
    %153 = vmatprep.subr.mxu0 0.0
    %154 = vmatpush1.msra.mxu0 0.0
    %155 = vmatprep.subr.mxu0 0.0
    %156 = vmatpush1.msra.mxu0 0.0
    %157 = vmatprep.subr.mxu0 0.0
    %158 = vmatpush1.msra.mxu0 0.0
    %159 = vmatprep.subr.mxu0 0.0
    %160 = vmatpush1.msra.mxu0 0.0
    %161 = vmatprep.subr.mxu0 0.0
    %162 = vmatpush1.msra.mxu0 0.0
    %163 = vmatprep.subr.mxu0 0.0
    %164 = vmatpush1.msra.mxu0 0.0
    %165 = vmatprep.subr.mxu0 0.0
    %166 = vmatpush1.msra.mxu0 0.0
    %167 = vmatprep.subr.mxu0 0.0
    %168 = vmatpush1.msra.mxu0 0.0
    %169 = vmatprep.subr.mxu0 0.0
    %170 = vmatpush1.msra.mxu0 0.0
    %171 = vmatprep.subr.mxu0 0.0
    %172 = vmatpush1.msra.mxu0 0.0
    %173 = vmatprep.subr.mxu0 0.0
    %174 = vmatpush1.msra.mxu0 %v135
    %175 = vmatprep.subr.mxu0 0.0
    %176 = vmatpush1.msra.mxu0 %v134
    %177 = vmatprep.subr.mxu0 0.0
    %178 = vmatpush1.msra.mxu0 %v133
    %179 = vmatprep.subr.mxu0 0.0
    %180 = vmatpush1.msra.mxu0 %v132
    %181 = vmatprep.subr.mxu0 0.0
    %182 = vmatpush2.msra.mxu0 0.0
    %183 = vmatprep.subr.mxu0 0.0
    %184 = vmatpush2.msra.mxu0 0.0
    %185 = vmatprep.subr.mxu0 0.0
    %186 = vmatpush2.msra.mxu0 0.0
    %187 = vmatprep.subr.mxu0 0.0
    %188 = vmatpush2.msra.mxu0 0.0
    %189 = vmatprep.subr.mxu0 0.0
    %190 = vmatpush2.msra.mxu0 0.0
    %191 = vmatprep.subr.mxu0 0.0
    %192 = vmatpush2.msra.mxu0 0.0
    %193 = vmatprep.subr.mxu0 0.0
    %194 = vmatpush2.msra.mxu0 0.0
    %195 = vmatprep.subr.mxu0 0.0
    %196 = vmatpush2.msra.mxu0 0.0
    %197 = vmatprep.subr.mxu0 0.0
    %198 = vmatpush2.msra.mxu0 0.0
    %199 = vmatprep.subr.mxu0 0.0
    %200 = vmatpush2.msra.mxu0 0.0
    %201 = vmatprep.subr.mxu0 0.0
    %202 = vmatpush2.msra.mxu0 0.0
    %203 = vmatprep.subr.mxu0 0.0
    %204 = vmatpush2.msra.mxu0 0.0
    %205 = vmatprep.subr.mxu0 0.0
    %206 = vmatpush2.msra.mxu0 0.0
    %207 = vmatprep.subr.mxu0 0.0
    %208 = vmatpush2.msra.mxu0 0.0
    %209 = vmatprep.subr.mxu0 0.0
    %210 = vmatpush2.msra.mxu0 0.0
    %211 = vmatprep.subr.mxu0 0.0
    %212 = vmatpush2.msra.mxu0 0.0
    %213 = vmatprep.mubr.f32.mxu0 0.0
    %214 = vmatmul.mubr.f32.gmra.mxu0 %v144
    %v215 = vpop.f32.mrf.mxu0
    %v216 = vadd.f32 %v141, %v215
    %v217 = vpop.f32.mrf.mxu0
    %218 = vmatprep.mubr.f32.mxu0 0.0
    %219 = vmatmul.mubr.f32.gmra.mxu0 %v147
    %v220 = vpop.f32.mrf.mxu0
    %v221 = vadd.f32 %v141, %v220
    %v222 = vpop.f32.mrf.mxu0
    %223 = vdwg.mxu0
    %226 = vrot.lane.b32.xlu0 %v216, 120
    %v227 = vpop.permute.xlu0 %226
    %228 = vrot.lane.b32.xlu0 %v221, 120
    %v229 = vpop.permute.xlu0 %228
    %230 = vrot.lane.b32.xlu0 %v216, 112
    %v231 = vpop.permute.xlu0 %230
    %232 = vrot.lane.b32.xlu0 %v221, 112
    %v233 = vpop.permute.xlu0 %232
    %234 = vrot.lane.b32.xlu0 %v216, 104
    %v235 = vpop.permute.xlu0 %234
    %236 = vrot.lane.b32.xlu0 %v221, 104
    %v237 = vpop.permute.xlu0 %236
    %238 = vrot.lane.b32.xlu0 %v216, 96
    %v239 = vpop.permute.xlu0 %238
    %240 = vrot.lane.b32.xlu0 %v221, 96
    %v241 = vpop.permute.xlu0 %240
    %vm242 = vcmask 64512
    %v243 = vsel %vm242, %v216, 0
    %v245 = vsel %vm242, %v221, 0
    %v247 = vsel %vm242, %v239, 0
    %v249 = vsel %vm242, %v241, 0
    %251 = vmatprep.subr.mxu0 0.0
    %252 = vmatpush1.xpose.msra.mxu0 0.0
    %253 = vmatprep.subr.mxu0 0.0
    %254 = vmatpush1.xpose.msra.mxu0 0.0
    %255 = vmatprep.subr.mxu0 0.0
    %256 = vmatpush1.xpose.msra.mxu0 0.0
    %257 = vmatprep.subr.mxu0 0.0
    %258 = vmatpush1.xpose.msra.mxu0 0.0
    %259 = vmatprep.subr.mxu0 0.0
    %260 = vmatpush1.xpose.msra.mxu0 0.0
    %261 = vmatprep.subr.mxu0 0.0
    %262 = vmatpush1.xpose.msra.mxu0 0.0
    %263 = vmatprep.subr.mxu0 0.0
    %264 = vmatpush1.xpose.msra.mxu0 0.0
    %265 = vmatprep.subr.mxu0 0.0
    %266 = vmatpush1.xpose.msra.mxu0 0.0
    %267 = vmatprep.subr.mxu0 0.0
    %268 = vmatpush1.xpose.msra.mxu0 0.0
    %269 = vmatprep.subr.mxu0 0.0
    %270 = vmatpush1.xpose.msra.mxu0 0.0
    %271 = vmatprep.subr.mxu0 0.0
    %272 = vmatpush1.xpose.msra.mxu0 0.0
    %273 = vmatprep.subr.mxu0 0.0
    %274 = vmatpush1.xpose.msra.mxu0 0.0
    %275 = vmatprep.subr.mxu0 0.0
    %276 = vmatpush1.xpose.msra.mxu0 0.0
    %277 = vmatprep.subr.mxu0 0.0
    %278 = vmatpush1.xpose.msra.mxu0 0.0
    %279 = vmatprep.subr.mxu0 0.0
    %280 = vmatpush1.xpose.msra.mxu0 %v249
    %281 = vmatprep.subr.mxu0 0.0
    %282 = vmatpush1.xpose.msra.mxu0 %v247
    %283 = vmatprep.subr.mxu0 0.0
    %284 = vmatpush2.xpose.msra.mxu0 0.0
    %285 = vmatprep.subr.mxu0 0.0
    %286 = vmatpush2.xpose.msra.mxu0 0.0
    %287 = vmatprep.subr.mxu0 0.0
    %288 = vmatpush2.xpose.msra.mxu0 0.0
    %289 = vmatprep.subr.mxu0 0.0
    %290 = vmatpush2.xpose.msra.mxu0 0.0
    %291 = vmatprep.subr.mxu0 0.0
    %292 = vmatpush2.xpose.msra.mxu0 0.0
    %293 = vmatprep.subr.mxu0 0.0
    %294 = vmatpush2.xpose.msra.mxu0 0.0
    %295 = vmatprep.subr.mxu0 0.0
    %296 = vmatpush2.xpose.msra.mxu0 0.0
    %297 = vmatprep.subr.mxu0 0.0
    %298 = vmatpush2.xpose.msra.mxu0 0.0
    %299 = vmatprep.subr.mxu0 0.0
    %300 = vmatpush2.xpose.msra.mxu0 0.0
    %301 = vmatprep.subr.mxu0 0.0
    %302 = vmatpush2.xpose.msra.mxu0 0.0
    %303 = vmatprep.subr.mxu0 0.0
    %304 = vmatpush2.xpose.msra.mxu0 0.0
    %305 = vmatprep.subr.mxu0 0.0
    %306 = vmatpush2.xpose.msra.mxu0 0.0
    %307 = vmatprep.subr.mxu0 0.0
    %308 = vmatpush2.xpose.msra.mxu0 0.0
    %309 = vmatprep.subr.mxu0 0.0
    %310 = vmatpush2.xpose.msra.mxu0 0.0
    %311 = vmatprep.subr.mxu0 0.0
    %312 = vmatpush2.xpose.msra.mxu0 0.0
    %313 = vmatprep.subr.mxu0 0.0
    %314 = vmatpush2.xpose.msra.mxu0 0.0
    %315 = vmatprep.mubr.f32.mxu0 0.0
    %316 = vmatmul.mubr.f32.gmra.mxu0 %v243
    %v317 = vpop.f32.mrf.mxu0
    %v318 = vadd.f32 0.0, %v317
    %v319 = vpop.f32.mrf.mxu0
    %320 = vmatprep.mubr.f32.mxu0 0.0
    %321 = vmatmul.mubr.f32.gmra.mxu0 %v245
    %v322 = vpop.f32.mrf.mxu0
    %v323 = vadd.f32 0.0, %v322
    %v324 = vpop.f32.mrf.mxu0
    %325 = vdwg.mxu0
    %326 = vrot.lane.b32.xlu0 %v227, 96
    %v327 = vpop.permute.xlu0 %326
    %328 = vrot.lane.b32.xlu0 %v229, 96
    %v329 = vpop.permute.xlu0 %328
    %v330 = vsel %vm242, %v227, 0
    %v332 = vsel %vm242, %v229, 0
    %v334 = vsel %vm242, %v327, 0
    %v336 = vsel %vm242, %v329, 0
    %338 = vmatprep.subr.mxu0 0.0
    %339 = vmatpush1.xpose.msra.mxu0 0.0
    %340 = vmatprep.subr.mxu0 0.0
    %341 = vmatpush1.xpose.msra.mxu0 0.0
    %342 = vmatprep.subr.mxu0 0.0
    %343 = vmatpush1.xpose.msra.mxu0 0.0
    %344 = vmatprep.subr.mxu0 0.0
    %345 = vmatpush1.xpose.msra.mxu0 0.0
    %346 = vmatprep.subr.mxu0 0.0
    %347 = vmatpush1.xpose.msra.mxu0 0.0
    %348 = vmatprep.subr.mxu0 0.0
    %349 = vmatpush1.xpose.msra.mxu0 0.0
    %350 = vmatprep.subr.mxu0 0.0
    %351 = vmatpush1.xpose.msra.mxu0 0.0
    %352 = vmatprep.subr.mxu0 0.0
    %353 = vmatpush1.xpose.msra.mxu0 0.0
    %354 = vmatprep.subr.mxu0 0.0
    %355 = vmatpush1.xpose.msra.mxu0 0.0
    %356 = vmatprep.subr.mxu0 0.0
    %357 = vmatpush1.xpose.msra.mxu0 0.0
    %358 = vmatprep.subr.mxu0 0.0
    %359 = vmatpush1.xpose.msra.mxu0 0.0
    %360 = vmatprep.subr.mxu0 0.0
    %361 = vmatpush1.xpose.msra.mxu0 0.0
    %362 = vmatprep.subr.mxu0 0.0
    %363 = vmatpush1.xpose.msra.mxu0 0.0
    %364 = vmatprep.subr.mxu0 0.0
    %365 = vmatpush1.xpose.msra.mxu0 0.0
    %366 = vmatprep.subr.mxu0 0.0
    %367 = vmatpush1.xpose.msra.mxu0 %v336
    %368 = vmatprep.subr.mxu0 0.0
    %369 = vmatpush1.xpose.msra.mxu0 %v334
    %370 = vmatprep.subr.mxu0 0.0
    %371 = vmatpush2.xpose.msra.mxu0 0.0
    %372 = vmatprep.subr.mxu0 0.0
    %373 = vmatpush2.xpose.msra.mxu0 0.0
    %374 = vmatprep.subr.mxu0 0.0
    %375 = vmatpush2.xpose.msra.mxu0 0.0
    %376 = vmatprep.subr.mxu0 0.0
    %377 = vmatpush2.xpose.msra.mxu0 0.0
    %378 = vmatprep.subr.mxu0 0.0
    %379 = vmatpush2.xpose.msra.mxu0 0.0
    %380 = vmatprep.subr.mxu0 0.0
    %381 = vmatpush2.xpose.msra.mxu0 0.0
    %382 = vmatprep.subr.mxu0 0.0
    %383 = vmatpush2.xpose.msra.mxu0 0.0
    %384 = vmatprep.subr.mxu0 0.0
    %385 = vmatpush2.xpose.msra.mxu0 0.0
    %386 = vmatprep.subr.mxu0 0.0
    %387 = vmatpush2.xpose.msra.mxu0 0.0
    %388 = vmatprep.subr.mxu0 0.0
    %389 = vmatpush2.xpose.msra.mxu0 0.0
    %390 = vmatprep.subr.mxu0 0.0
    %391 = vmatpush2.xpose.msra.mxu0 0.0
    %392 = vmatprep.subr.mxu0 0.0
    %393 = vmatpush2.xpose.msra.mxu0 0.0
    %394 = vmatprep.subr.mxu0 0.0
    %395 = vmatpush2.xpose.msra.mxu0 0.0
    %396 = vmatprep.subr.mxu0 0.0
    %397 = vmatpush2.xpose.msra.mxu0 0.0
    %398 = vmatprep.subr.mxu0 0.0
    %399 = vmatpush2.xpose.msra.mxu0 0.0
    %400 = vmatprep.subr.mxu0 0.0
    %401 = vmatpush2.xpose.msra.mxu0 0.0
    %402 = vmatprep.mubr.f32.mxu0 0.0
    %403 = vmatmul.mubr.f32.gmra.mxu0 %v330
    %v404 = vpop.f32.mrf.mxu0
    %v405 = vadd.f32 0.0, %v404
    %v406 = vpop.f32.mrf.mxu0
    %407 = vmatprep.mubr.f32.mxu0 0.0
    %408 = vmatmul.mubr.f32.gmra.mxu0 %v332
    %v409 = vpop.f32.mrf.mxu0
    %v410 = vadd.f32 0.0, %v409
    %v411 = vpop.f32.mrf.mxu0
    %412 = vdwg.mxu0
    %413 = vrot.lane.b32.xlu0 %v231, 96
    %v414 = vpop.permute.xlu0 %413
    %415 = vrot.lane.b32.xlu0 %v233, 96
    %v416 = vpop.permute.xlu0 %415
    %v417 = vsel %vm242, %v231, 0
    %v419 = vsel %vm242, %v233, 0
    %v421 = vsel %vm242, %v414, 0
    %v423 = vsel %vm242, %v416, 0
    %425 = vmatprep.subr.mxu0 0.0
    %426 = vmatpush1.xpose.msra.mxu0 0.0
    %427 = vmatprep.subr.mxu0 0.0
    %428 = vmatpush1.xpose.msra.mxu0 0.0
    %429 = vmatprep.subr.mxu0 0.0
    %430 = vmatpush1.xpose.msra.mxu0 0.0
    %431 = vmatprep.subr.mxu0 0.0
    %432 = vmatpush1.xpose.msra.mxu0 0.0
    %433 = vmatprep.subr.mxu0 0.0
    %434 = vmatpush1.xpose.msra.mxu0 0.0
    %435 = vmatprep.subr.mxu0 0.0
    %436 = vmatpush1.xpose.msra.mxu0 0.0
    %437 = vmatprep.subr.mxu0 0.0
    %438 = vmatpush1.xpose.msra.mxu0 0.0
    %439 = vmatprep.subr.mxu0 0.0
    %440 = vmatpush1.xpose.msra.mxu0 0.0
    %441 = vmatprep.subr.mxu0 0.0
    %442 = vmatpush1.xpose.msra.mxu0 0.0
    %443 = vmatprep.subr.mxu0 0.0
    %444 = vmatpush1.xpose.msra.mxu0 0.0
    %445 = vmatprep.subr.mxu0 0.0
    %446 = vmatpush1.xpose.msra.mxu0 0.0
    %447 = vmatprep.subr.mxu0 0.0
    %448 = vmatpush1.xpose.msra.mxu0 0.0
    %449 = vmatprep.subr.mxu0 0.0
    %450 = vmatpush1.xpose.msra.mxu0 0.0
    %451 = vmatprep.subr.mxu0 0.0
    %452 = vmatpush1.xpose.msra.mxu0 0.0
    %453 = vmatprep.subr.mxu0 0.0
    %454 = vmatpush1.xpose.msra.mxu0 %v423
    %455 = vmatprep.subr.mxu0 0.0
    %456 = vmatpush1.xpose.msra.mxu0 %v421
    %457 = vmatprep.subr.mxu0 0.0
    %458 = vmatpush2.xpose.msra.mxu0 0.0
    %459 = vmatprep.subr.mxu0 0.0
    %460 = vmatpush2.xpose.msra.mxu0 0.0
    %461 = vmatprep.subr.mxu0 0.0
    %462 = vmatpush2.xpose.msra.mxu0 0.0
    %463 = vmatprep.subr.mxu0 0.0
    %464 = vmatpush2.xpose.msra.mxu0 0.0
    %465 = vmatprep.subr.mxu0 0.0
    %466 = vmatpush2.xpose.msra.mxu0 0.0
    %467 = vmatprep.subr.mxu0 0.0
    %468 = vmatpush2.xpose.msra.mxu0 0.0
    %469 = vmatprep.subr.mxu0 0.0
    %470 = vmatpush2.xpose.msra.mxu0 0.0
    %471 = vmatprep.subr.mxu0 0.0
    %472 = vmatpush2.xpose.msra.mxu0 0.0
    %473 = vmatprep.subr.mxu0 0.0
    %474 = vmatpush2.xpose.msra.mxu0 0.0
    %475 = vmatprep.subr.mxu0 0.0
    %476 = vmatpush2.xpose.msra.mxu0 0.0
    %477 = vmatprep.subr.mxu0 0.0
    %478 = vmatpush2.xpose.msra.mxu0 0.0
    %479 = vmatprep.subr.mxu0 0.0
    %480 = vmatpush2.xpose.msra.mxu0 0.0
    %481 = vmatprep.subr.mxu0 0.0
    %482 = vmatpush2.xpose.msra.mxu0 0.0
    %483 = vmatprep.subr.mxu0 0.0
    %484 = vmatpush2.xpose.msra.mxu0 0.0
    %485 = vmatprep.subr.mxu0 0.0
    %486 = vmatpush2.xpose.msra.mxu0 0.0
    %487 = vmatprep.subr.mxu0 0.0
    %488 = vmatpush2.xpose.msra.mxu0 0.0
    %489 = vmatprep.mubr.f32.mxu0 0.0
    %490 = vmatmul.mubr.f32.gmra.mxu0 %v417
    %v491 = vpop.f32.mrf.mxu0
    %v492 = vadd.f32 0.0, %v491
    %v493 = vpop.f32.mrf.mxu0
    %494 = vmatprep.mubr.f32.mxu0 0.0
    %495 = vmatmul.mubr.f32.gmra.mxu0 %v419
    %v496 = vpop.f32.mrf.mxu0
    %v497 = vadd.f32 0.0, %v496
    %v498 = vpop.f32.mrf.mxu0
    %499 = vdwg.mxu0
    %500 = vrot.lane.b32.xlu0 %v235, 96
    %v501 = vpop.permute.xlu0 %500
    %502 = vrot.lane.b32.xlu0 %v237, 96
    %v503 = vpop.permute.xlu0 %502
    %v504 = vsel %vm242, %v235, 0
    %v506 = vsel %vm242, %v237, 0
    %v508 = vsel %vm242, %v501, 0
    %v510 = vsel %vm242, %v503, 0
    %512 = vmatprep.subr.mxu0 0.0
    %513 = vmatpush1.xpose.msra.mxu0 0.0
    %514 = vmatprep.subr.mxu0 0.0
    %515 = vmatpush1.xpose.msra.mxu0 0.0
    %516 = vmatprep.subr.mxu0 0.0
    %517 = vmatpush1.xpose.msra.mxu0 0.0
    %518 = vmatprep.subr.mxu0 0.0
    %519 = vmatpush1.xpose.msra.mxu0 0.0
    %520 = vmatprep.subr.mxu0 0.0
    %521 = vmatpush1.xpose.msra.mxu0 0.0
    %522 = vmatprep.subr.mxu0 0.0
    %523 = vmatpush1.xpose.msra.mxu0 0.0
    %524 = vmatprep.subr.mxu0 0.0
    %525 = vmatpush1.xpose.msra.mxu0 0.0
    %526 = vmatprep.subr.mxu0 0.0
    %527 = vmatpush1.xpose.msra.mxu0 0.0
    %528 = vmatprep.subr.mxu0 0.0
    %529 = vmatpush1.xpose.msra.mxu0 0.0
    %530 = vmatprep.subr.mxu0 0.0
    %531 = vmatpush1.xpose.msra.mxu0 0.0
    %532 = vmatprep.subr.mxu0 0.0
    %533 = vmatpush1.xpose.msra.mxu0 0.0
    %534 = vmatprep.subr.mxu0 0.0
    %535 = vmatpush1.xpose.msra.mxu0 0.0
    %536 = vmatprep.subr.mxu0 0.0
    %537 = vmatpush1.xpose.msra.mxu0 0.0
    %538 = vmatprep.subr.mxu0 0.0
    %539 = vmatpush1.xpose.msra.mxu0 0.0
    %540 = vmatprep.subr.mxu0 0.0
    %541 = vmatpush1.xpose.msra.mxu0 %v510
    %542 = vmatprep.subr.mxu0 0.0
    %543 = vmatpush1.xpose.msra.mxu0 %v508
    %544 = vmatprep.subr.mxu0 0.0
    %545 = vmatpush2.xpose.msra.mxu0 0.0
    %546 = vmatprep.subr.mxu0 0.0
    %547 = vmatpush2.xpose.msra.mxu0 0.0
    %548 = vmatprep.subr.mxu0 0.0
    %549 = vmatpush2.xpose.msra.mxu0 0.0
    %550 = vmatprep.subr.mxu0 0.0
    %551 = vmatpush2.xpose.msra.mxu0 0.0
    %552 = vmatprep.subr.mxu0 0.0
    %553 = vmatpush2.xpose.msra.mxu0 0.0
    %554 = vmatprep.subr.mxu0 0.0
    %555 = vmatpush2.xpose.msra.mxu0 0.0
    %556 = vmatprep.subr.mxu0 0.0
    %557 = vmatpush2.xpose.msra.mxu0 0.0
    %558 = vmatprep.subr.mxu0 0.0
    %559 = vmatpush2.xpose.msra.mxu0 0.0
    %560 = vmatprep.subr.mxu0 0.0
    %561 = vmatpush2.xpose.msra.mxu0 0.0
    %562 = vmatprep.subr.mxu0 0.0
    %563 = vmatpush2.xpose.msra.mxu0 0.0
    %564 = vmatprep.subr.mxu0 0.0
    %565 = vmatpush2.xpose.msra.mxu0 0.0
    %566 = vmatprep.subr.mxu0 0.0
    %567 = vmatpush2.xpose.msra.mxu0 0.0
    %568 = vmatprep.subr.mxu0 0.0
    %569 = vmatpush2.xpose.msra.mxu0 0.0
    %570 = vmatprep.subr.mxu0 0.0
    %571 = vmatpush2.xpose.msra.mxu0 0.0
    %572 = vmatprep.subr.mxu0 0.0
    %573 = vmatpush2.xpose.msra.mxu0 0.0
    %574 = vmatprep.subr.mxu0 0.0
    %575 = vmatpush2.xpose.msra.mxu0 0.0
    %576 = vmatprep.mubr.f32.mxu0 0.0
    %577 = vmatmul.mubr.f32.gmra.mxu0 %v504
    %v578 = vpop.f32.mrf.mxu0
    %v579 = vadd.f32 0.0, %v578
    %v580 = vpop.f32.mrf.mxu0
    %581 = vmatprep.mubr.f32.mxu0 0.0
    %582 = vmatmul.mubr.f32.gmra.mxu0 %v506
    %v583 = vpop.f32.mrf.mxu0
    %v584 = vadd.f32 0.0, %v583
    %v585 = vpop.f32.mrf.mxu0
    %586 = vdwg.mxu0
    %v587 = vmul.f32 %v318, 0.35355338
    %v588 = vmul.f32 %v323, 0.35355338
    %v589 = vmul.f32 %v405, 0.35355338
    %v590 = vmul.f32 %v410, 0.35355338
    %v591 = vmul.f32 %v492, 0.35355338
    %v592 = vmul.f32 %v497, 0.35355338
    %v593 = vmul.f32 %v579, 0.35355338
    %v594 = vmul.f32 %v584, 0.35355338
    %v595 = vsel %vm65, 1, 0
    %v596 = vsel %vm66, 1, 0
    %vm597 = vcmp.eq.s32.totalorder %v595, 1
    %vm598 = vcmp.eq.s32.totalorder %v596, 1
    %v599 = vsel %vm597, -1e+09, %v587
    %v600 = vsel %vm598, -1e+09, %v588
    %v601 = vsel %vm597, -1e+09, %v589
    %v602 = vsel %vm598, -1e+09, %v590
    %v603 = vsel %vm597, -1e+09, %v591
    %v604 = vsel %vm598, -1e+09, %v592
    %v605 = vsel %vm597, -1e+09, %v593
    %v606 = vsel %vm598, -1e+09, %v594
    %vm607 = vcmask 130048
    %v608 = vsel %vm607, %v599, -inf
    %609 = vmax.xlane.f32.xlu0 %v608
    %v610 = vpop.xlane.xlu0 %609
    %v611 = vsel %vm607, %v600, -inf
    %612 = vmax.xlane.f32.xlu0 %v611
    %v613 = vpop.xlane.xlu0 %612
    %v614 = vsel %vm607, %v601, -inf
    %615 = vmax.xlane.f32.xlu0 %v614
    %v616 = vpop.xlane.xlu0 %615
    %v617 = vsel %vm607, %v602, -inf
    %618 = vmax.xlane.f32.xlu0 %v617
    %v619 = vpop.xlane.xlu0 %618
    %v620 = vsel %vm607, %v603, -inf
    %621 = vmax.xlane.f32.xlu0 %v620
    %v622 = vpop.xlane.xlu0 %621
    %v623 = vsel %vm607, %v604, -inf
    %624 = vmax.xlane.f32.xlu0 %v623
    %v625 = vpop.xlane.xlu0 %624
    %v626 = vsel %vm607, %v605, -inf
    %627 = vmax.xlane.f32.xlu0 %v626
    %v628 = vpop.xlane.xlu0 %627
    %v629 = vsel %vm607, %v606, -inf
    %630 = vmax.xlane.f32.xlu0 %v629
    %v631 = vpop.xlane.xlu0 %630
    %v632 = vsub.f32 %v599, %v610
    %v633 = vsub.f32 %v600, %v613
    %v634 = vsub.f32 %v601, %v616
    %v635 = vsub.f32 %v602, %v619
    %v636 = vsub.f32 %v603, %v622
    %v637 = vsub.f32 %v604, %v625
    %v638 = vsub.f32 %v605, %v628
    %v639 = vsub.f32 %v606, %v631
    %v640 = vmul.f32 %v632, 1.442695
    %v641 = vpow.pop %v640
    %v642 = vmul.f32 %v633, 1.442695
    %v643 = vpow.pop %v642
    %v644 = vmul.f32 %v634, 1.442695
    %v645 = vpow.pop %v644
    %v646 = vmul.f32 %v635, 1.442695
    %v647 = vpow.pop %v646
    %v648 = vmul.f32 %v636, 1.442695
    %v649 = vpow.pop %v648
    %v650 = vmul.f32 %v637, 1.442695
    %v651 = vpow.pop %v650
    %v652 = vmul.f32 %v638, 1.442695
    %v653 = vpow.pop %v652
    %v654 = vmul.f32 %v639, 1.442695
    %v655 = vpow.pop %v654
    %v656 = vsel %vm607, %v641, 0.0
    %657 = vadd.xlane.f32.xlu0 %v656
    %v658 = vpop.xlane.xlu0 %657
    %v659 = vsel %vm607, %v643, 0.0
    %660 = vadd.xlane.f32.xlu0 %v659
    %v661 = vpop.xlane.xlu0 %660
    %v662 = vsel %vm607, %v645, 0.0
    %663 = vadd.xlane.f32.xlu0 %v662
    %v664 = vpop.xlane.xlu0 %663
    %v665 = vsel %vm607, %v647, 0.0
    %666 = vadd.xlane.f32.xlu0 %v665
    %v667 = vpop.xlane.xlu0 %666
    %v668 = vsel %vm607, %v649, 0.0
    %669 = vadd.xlane.f32.xlu0 %v668
    %v670 = vpop.xlane.xlu0 %669
    %v671 = vsel %vm607, %v651, 0.0
    %672 = vadd.xlane.f32.xlu0 %v671
    %v673 = vpop.xlane.xlu0 %672
    %v674 = vsel %vm607, %v653, 0.0
    %675 = vadd.xlane.f32.xlu0 %v674
    %v676 = vpop.xlane.xlu0 %675
    %v677 = vsel %vm607, %v655, 0.0
    %678 = vadd.xlane.f32.xlu0 %v677
    %v679 = vpop.xlane.xlu0 %678
    %v680 = vrcp.pop %v658
    %v681 = vrcp.pop %v661
    %v682 = vrcp.pop %v664
    %v683 = vrcp.pop %v667
    %v684 = vrcp.pop %v670
    %v685 = vrcp.pop %v673
    %v686 = vrcp.pop %v676
    %v687 = vrcp.pop %v679
    %v688 = vmul.f32 %v641, %v680
    %v689 = vmul.f32 %v643, %v681
    %v690 = vmul.f32 %v645, %v682
    %v691 = vmul.f32 %v647, %v683
    %v692 = vmul.f32 %v649, %v684
    %v693 = vmul.f32 %v651, %v685
    %v694 = vmul.f32 %v653, %v686
    %v695 = vmul.f32 %v655, %v687
    %696 = vrot.lane.b32.xlu0 %v216, 64
    %v697 = vpop.permute.xlu0 %696
    %698 = vrot.lane.b32.xlu0 %v221, 64
    %v699 = vpop.permute.xlu0 %698
    %v703 = vsel %vm607, %v688, 0
    %v706 = vsel %vm607, %v689, 0
    %708 = vmatprep.subr.mxu0 0.0
    %709 = vmatpush1.msra.mxu0 0.0
    %710 = vmatprep.subr.mxu0 0.0
    %711 = vmatpush1.msra.mxu0 0.0
    %712 = vmatprep.subr.mxu0 0.0
    %713 = vmatpush1.msra.mxu0 0.0
    %714 = vmatprep.subr.mxu0 0.0
    %715 = vmatpush1.msra.mxu0 0.0
    %716 = vmatprep.subr.mxu0 0.0
    %717 = vmatpush1.msra.mxu0 0.0
    %718 = vmatprep.subr.mxu0 0.0
    %719 = vmatpush1.msra.mxu0 0.0
    %720 = vmatprep.subr.mxu0 0.0
    %721 = vmatpush1.msra.mxu0 0.0
    %722 = vmatprep.subr.mxu0 0.0
    %723 = vmatpush1.msra.mxu0 0.0
    %724 = vmatprep.subr.mxu0 0.0
    %725 = vmatpush1.msra.mxu0 0.0
    %726 = vmatprep.subr.mxu0 0.0
    %727 = vmatpush1.msra.mxu0 0.0
    %728 = vmatprep.subr.mxu0 0.0
    %729 = vmatpush1.msra.mxu0 0.0
    %730 = vmatprep.subr.mxu0 0.0
    %731 = vmatpush1.msra.mxu0 0.0
    %732 = vmatprep.subr.mxu0 0.0
    %733 = vmatpush1.msra.mxu0 0.0
    %734 = vmatprep.subr.mxu0 0.0
    %735 = vmatpush1.msra.mxu0 0.0
    %736 = vmatprep.subr.mxu0 0.0
    %737 = vmatpush1.msra.mxu0 %v699
    %738 = vmatprep.subr.mxu0 0.0
    %739 = vmatpush1.msra.mxu0 %v697
    %740 = vmatprep.subr.mxu0 0.0
    %741 = vmatpush2.msra.mxu0 0.0
    %742 = vmatprep.subr.mxu0 0.0
    %743 = vmatpush2.msra.mxu0 0.0
    %744 = vmatprep.subr.mxu0 0.0
    %745 = vmatpush2.msra.mxu0 0.0
    %746 = vmatprep.subr.mxu0 0.0
    %747 = vmatpush2.msra.mxu0 0.0
    %748 = vmatprep.subr.mxu0 0.0
    %749 = vmatpush2.msra.mxu0 0.0
    %750 = vmatprep.subr.mxu0 0.0
    %751 = vmatpush2.msra.mxu0 0.0
    %752 = vmatprep.subr.mxu0 0.0
    %753 = vmatpush2.msra.mxu0 0.0
    %754 = vmatprep.subr.mxu0 0.0
    %755 = vmatpush2.msra.mxu0 0.0
    %756 = vmatprep.subr.mxu0 0.0
    %757 = vmatpush2.msra.mxu0 0.0
    %758 = vmatprep.subr.mxu0 0.0
    %759 = vmatpush2.msra.mxu0 0.0
    %760 = vmatprep.subr.mxu0 0.0
    %761 = vmatpush2.msra.mxu0 0.0
    %762 = vmatprep.subr.mxu0 0.0
    %763 = vmatpush2.msra.mxu0 0.0
    %764 = vmatprep.subr.mxu0 0.0
    %765 = vmatpush2.msra.mxu0 0.0
    %766 = vmatprep.subr.mxu0 0.0
    %767 = vmatpush2.msra.mxu0 0.0
    %768 = vmatprep.subr.mxu0 0.0
    %769 = vmatpush2.msra.mxu0 0.0
    %770 = vmatprep.subr.mxu0 0.0
    %771 = vmatpush2.msra.mxu0 0.0
    %772 = vmatprep.mubr.f32.mxu0 0.0
    %773 = vmatmul.mubr.f32.gmra.mxu0 %v703
    %v774 = vpop.f32.mrf.mxu0
    %v775 = vadd.f32 0.0, %v774
    %v776 = vpop.f32.mrf.mxu0
    %777 = vmatprep.mubr.f32.mxu0 0.0
    %778 = vmatmul.mubr.f32.gmra.mxu0 %v706
    %v779 = vpop.f32.mrf.mxu0
    %v780 = vadd.f32 0.0, %v779
    %v781 = vpop.f32.mrf.mxu0
    %782 = vdwg.mxu0
    %783 = vrot.lane.b32.xlu0 %v227, 64
    %v784 = vpop.permute.xlu0 %783
    %785 = vrot.lane.b32.xlu0 %v229, 64
    %v786 = vpop.permute.xlu0 %785
    %v790 = vsel %vm607, %v690, 0
    %v793 = vsel %vm607, %v691, 0
    %795 = vmatprep.subr.mxu0 0.0
    %796 = vmatpush1.msra.mxu0 0.0
    %797 = vmatprep.subr.mxu0 0.0
    %798 = vmatpush1.msra.mxu0 0.0
    %799 = vmatprep.subr.mxu0 0.0
    %800 = vmatpush1.msra.mxu0 0.0
    %801 = vmatprep.subr.mxu0 0.0
    %802 = vmatpush1.msra.mxu0 0.0
    %803 = vmatprep.subr.mxu0 0.0
    %804 = vmatpush1.msra.mxu0 0.0
    %805 = vmatprep.subr.mxu0 0.0
    %806 = vmatpush1.msra.mxu0 0.0
    %807 = vmatprep.subr.mxu0 0.0
    %808 = vmatpush1.msra.mxu0 0.0
    %809 = vmatprep.subr.mxu0 0.0
    %810 = vmatpush1.msra.mxu0 0.0
    %811 = vmatprep.subr.mxu0 0.0
    %812 = vmatpush1.msra.mxu0 0.0
    %813 = vmatprep.subr.mxu0 0.0
    %814 = vmatpush1.msra.mxu0 0.0
    %815 = vmatprep.subr.mxu0 0.0
    %816 = vmatpush1.msra.mxu0 0.0
    %817 = vmatprep.subr.mxu0 0.0
    %818 = vmatpush1.msra.mxu0 0.0
    %819 = vmatprep.subr.mxu0 0.0
    %820 = vmatpush1.msra.mxu0 0.0
    %821 = vmatprep.subr.mxu0 0.0
    %822 = vmatpush1.msra.mxu0 0.0
    %823 = vmatprep.subr.mxu0 0.0
    %824 = vmatpush1.msra.mxu0 %v786
    %825 = vmatprep.subr.mxu0 0.0
    %826 = vmatpush1.msra.mxu0 %v784
    %827 = vmatprep.subr.mxu0 0.0
    %828 = vmatpush2.msra.mxu0 0.0
    %829 = vmatprep.subr.mxu0 0.0
    %830 = vmatpush2.msra.mxu0 0.0
    %831 = vmatprep.subr.mxu0 0.0
    %832 = vmatpush2.msra.mxu0 0.0
    %833 = vmatprep.subr.mxu0 0.0
    %834 = vmatpush2.msra.mxu0 0.0
    %835 = vmatprep.subr.mxu0 0.0
    %836 = vmatpush2.msra.mxu0 0.0
    %837 = vmatprep.subr.mxu0 0.0
    %838 = vmatpush2.msra.mxu0 0.0
    %839 = vmatprep.subr.mxu0 0.0
    %840 = vmatpush2.msra.mxu0 0.0
    %841 = vmatprep.subr.mxu0 0.0
    %842 = vmatpush2.msra.mxu0 0.0
    %843 = vmatprep.subr.mxu0 0.0
    %844 = vmatpush2.msra.mxu0 0.0
    %845 = vmatprep.subr.mxu0 0.0
    %846 = vmatpush2.msra.mxu0 0.0
    %847 = vmatprep.subr.mxu0 0.0
    %848 = vmatpush2.msra.mxu0 0.0
    %849 = vmatprep.subr.mxu0 0.0
    %850 = vmatpush2.msra.mxu0 0.0
    %851 = vmatprep.subr.mxu0 0.0
    %852 = vmatpush2.msra.mxu0 0.0
    %853 = vmatprep.subr.mxu0 0.0
    %854 = vmatpush2.msra.mxu0 0.0
    %855 = vmatprep.subr.mxu0 0.0
    %856 = vmatpush2.msra.mxu0 0.0
    %857 = vmatprep.subr.mxu0 0.0
    %858 = vmatpush2.msra.mxu0 0.0
    %859 = vmatprep.mubr.f32.mxu0 0.0
    %860 = vmatmul.mubr.f32.gmra.mxu0 %v790
    %v861 = vpop.f32.mrf.mxu0
    %v862 = vadd.f32 0.0, %v861
    %v863 = vpop.f32.mrf.mxu0
    %864 = vmatprep.mubr.f32.mxu0 0.0
    %865 = vmatmul.mubr.f32.gmra.mxu0 %v793
    %v866 = vpop.f32.mrf.mxu0
    %v867 = vadd.f32 0.0, %v866
    %v868 = vpop.f32.mrf.mxu0
    %869 = vdwg.mxu0
    %870 = vrot.lane.b32.xlu0 %v231, 64
    %v871 = vpop.permute.xlu0 %870
    %872 = vrot.lane.b32.xlu0 %v233, 64
    %v873 = vpop.permute.xlu0 %872
    %v877 = vsel %vm607, %v692, 0
    %v880 = vsel %vm607, %v693, 0
    %882 = vmatprep.subr.mxu0 0.0
    %883 = vmatpush1.msra.mxu0 0.0
    %884 = vmatprep.subr.mxu0 0.0
    %885 = vmatpush1.msra.mxu0 0.0
    %886 = vmatprep.subr.mxu0 0.0
    %887 = vmatpush1.msra.mxu0 0.0
    %888 = vmatprep.subr.mxu0 0.0
    %889 = vmatpush1.msra.mxu0 0.0
    %890 = vmatprep.subr.mxu0 0.0
    %891 = vmatpush1.msra.mxu0 0.0
    %892 = vmatprep.subr.mxu0 0.0
    %893 = vmatpush1.msra.mxu0 0.0
    %894 = vmatprep.subr.mxu0 0.0
    %895 = vmatpush1.msra.mxu0 0.0
    %896 = vmatprep.subr.mxu0 0.0
    %897 = vmatpush1.msra.mxu0 0.0
    %898 = vmatprep.subr.mxu0 0.0
    %899 = vmatpush1.msra.mxu0 0.0
    %900 = vmatprep.subr.mxu0 0.0
    %901 = vmatpush1.msra.mxu0 0.0
    %902 = vmatprep.subr.mxu0 0.0
    %903 = vmatpush1.msra.mxu0 0.0
    %904 = vmatprep.subr.mxu0 0.0
    %905 = vmatpush1.msra.mxu0 0.0
    %906 = vmatprep.subr.mxu0 0.0
    %907 = vmatpush1.msra.mxu0 0.0
    %908 = vmatprep.subr.mxu0 0.0
    %909 = vmatpush1.msra.mxu0 0.0
    %910 = vmatprep.subr.mxu0 0.0
    %911 = vmatpush1.msra.mxu0 %v873
    %912 = vmatprep.subr.mxu0 0.0
    %913 = vmatpush1.msra.mxu0 %v871
    %914 = vmatprep.subr.mxu0 0.0
    %915 = vmatpush2.msra.mxu0 0.0
    %916 = vmatprep.subr.mxu0 0.0
    %917 = vmatpush2.msra.mxu0 0.0
    %918 = vmatprep.subr.mxu0 0.0
    %919 = vmatpush2.msra.mxu0 0.0
    %920 = vmatprep.subr.mxu0 0.0
    %921 = vmatpush2.msra.mxu0 0.0
    %922 = vmatprep.subr.mxu0 0.0
    %923 = vmatpush2.msra.mxu0 0.0
    %924 = vmatprep.subr.mxu0 0.0
    %925 = vmatpush2.msra.mxu0 0.0
    %926 = vmatprep.subr.mxu0 0.0
    %927 = vmatpush2.msra.mxu0 0.0
    %928 = vmatprep.subr.mxu0 0.0
    %929 = vmatpush2.msra.mxu0 0.0
    %930 = vmatprep.subr.mxu0 0.0
    %931 = vmatpush2.msra.mxu0 0.0
    %932 = vmatprep.subr.mxu0 0.0
    %933 = vmatpush2.msra.mxu0 0.0
    %934 = vmatprep.subr.mxu0 0.0
    %935 = vmatpush2.msra.mxu0 0.0
    %936 = vmatprep.subr.mxu0 0.0
    %937 = vmatpush2.msra.mxu0 0.0
    %938 = vmatprep.subr.mxu0 0.0
    %939 = vmatpush2.msra.mxu0 0.0
    %940 = vmatprep.subr.mxu0 0.0
    %941 = vmatpush2.msra.mxu0 0.0
    %942 = vmatprep.subr.mxu0 0.0
    %943 = vmatpush2.msra.mxu0 0.0
    %944 = vmatprep.subr.mxu0 0.0
    %945 = vmatpush2.msra.mxu0 0.0
    %946 = vmatprep.mubr.f32.mxu0 0.0
    %947 = vmatmul.mubr.f32.gmra.mxu0 %v877
    %v948 = vpop.f32.mrf.mxu0
    %v949 = vadd.f32 0.0, %v948
    %v950 = vpop.f32.mrf.mxu0
    %951 = vmatprep.mubr.f32.mxu0 0.0
    %952 = vmatmul.mubr.f32.gmra.mxu0 %v880
    %v953 = vpop.f32.mrf.mxu0
    %v954 = vadd.f32 0.0, %v953
    %v955 = vpop.f32.mrf.mxu0
    %956 = vdwg.mxu0
    %957 = vrot.lane.b32.xlu0 %v235, 64
    %v958 = vpop.permute.xlu0 %957
    %959 = vrot.lane.b32.xlu0 %v237, 64
    %v960 = vpop.permute.xlu0 %959
    %v964 = vsel %vm607, %v694, 0
    %v967 = vsel %vm607, %v695, 0
    %969 = vmatprep.subr.mxu0 0.0
    %970 = vmatpush1.msra.mxu0 0.0
    %971 = vmatprep.subr.mxu0 0.0
    %972 = vmatpush1.msra.mxu0 0.0
    %973 = vmatprep.subr.mxu0 0.0
    %974 = vmatpush1.msra.mxu0 0.0
    %975 = vmatprep.subr.mxu0 0.0
    %976 = vmatpush1.msra.mxu0 0.0
    %977 = vmatprep.subr.mxu0 0.0
    %978 = vmatpush1.msra.mxu0 0.0
    %979 = vmatprep.subr.mxu0 0.0
    %980 = vmatpush1.msra.mxu0 0.0
    %981 = vmatprep.subr.mxu0 0.0
    %982 = vmatpush1.msra.mxu0 0.0
    %983 = vmatprep.subr.mxu0 0.0
    %984 = vmatpush1.msra.mxu0 0.0
    %985 = vmatprep.subr.mxu0 0.0
    %986 = vmatpush1.msra.mxu0 0.0
    %987 = vmatprep.subr.mxu0 0.0
    %988 = vmatpush1.msra.mxu0 0.0
    %989 = vmatprep.subr.mxu0 0.0
    %990 = vmatpush1.msra.mxu0 0.0
    %991 = vmatprep.subr.mxu0 0.0
    %992 = vmatpush1.msra.mxu0 0.0
    %993 = vmatprep.subr.mxu0 0.0
    %994 = vmatpush1.msra.mxu0 0.0
    %995 = vmatprep.subr.mxu0 0.0
    %996 = vmatpush1.msra.mxu0 0.0
    %997 = vmatprep.subr.mxu0 0.0
    %998 = vmatpush1.msra.mxu0 %v960
    %999 = vmatprep.subr.mxu0 0.0
    %1000 = vmatpush1.msra.mxu0 %v958
    %1001 = vmatprep.subr.mxu0 0.0
    %1002 = vmatpush2.msra.mxu0 0.0
    %1003 = vmatprep.subr.mxu0 0.0
    %1004 = vmatpush2.msra.mxu0 0.0
    %1005 = vmatprep.subr.mxu0 0.0
    %1006 = vmatpush2.msra.mxu0 0.0
    %1007 = vmatprep.subr.mxu0 0.0
    %1008 = vmatpush2.msra.mxu0 0.0
    %1009 = vmatprep.subr.mxu0 0.0
    %1010 = vmatpush2.msra.mxu0 0.0
    %1011 = vmatprep.subr.mxu0 0.0
    %1012 = vmatpush2.msra.mxu0 0.0
    %1013 = vmatprep.subr.mxu0 0.0
    %1014 = vmatpush2.msra.mxu0 0.0
    %1015 = vmatprep.subr.mxu0 0.0
    %1016 = vmatpush2.msra.mxu0 0.0
    %1017 = vmatprep.subr.mxu0 0.0
    %1018 = vmatpush2.msra.mxu0 0.0
    %1019 = vmatprep.subr.mxu0 0.0
    %1020 = vmatpush2.msra.mxu0 0.0
    %1021 = vmatprep.subr.mxu0 0.0
    %1022 = vmatpush2.msra.mxu0 0.0
    %1023 = vmatprep.subr.mxu0 0.0
    %1024 = vmatpush2.msra.mxu0 0.0
    %1025 = vmatprep.subr.mxu0 0.0
    %1026 = vmatpush2.msra.mxu0 0.0
    %1027 = vmatprep.subr.mxu0 0.0
    %1028 = vmatpush2.msra.mxu0 0.0
    %1029 = vmatprep.subr.mxu0 0.0
    %1030 = vmatpush2.msra.mxu0 0.0
    %1031 = vmatprep.subr.mxu0 0.0
    %1032 = vmatpush2.msra.mxu0 0.0
    %1033 = vmatprep.mubr.f32.mxu0 0.0
    %1034 = vmatmul.mubr.f32.gmra.mxu0 %v964
    %v1035 = vpop.f32.mrf.mxu0
    %v1036 = vadd.f32 0.0, %v1035
    %v1037 = vpop.f32.mrf.mxu0
    %1038 = vmatprep.mubr.f32.mxu0 0.0
    %1039 = vmatmul.mubr.f32.gmra.mxu0 %v967
    %v1040 = vpop.f32.mrf.mxu0
    %v1041 = vadd.f32 0.0, %v1040
    %v1042 = vpop.f32.mrf.mxu0
    %1043 = vdwg.mxu0
    %v1044 = vld [vmem:[%s4] sm:$0xff]
    %v1045 = vld [vmem:[%s4 + $0x8] sm:$0xff]
    %v1046 = vld [vmem:[%s4 + $0x10] sm:$0xff]
    %v1047 = vld [vmem:[%s4 + $0x18] sm:$0xff]
    %v1049 = vsel %vm242, %v775, 0
    %v1052 = vsel %vm242, %v780, 0
    %1054 = vmatprep.subr.mxu0 0.0
    %1055 = vmatpush1.msra.mxu0 0.0
    %1056 = vmatprep.subr.mxu0 0.0
    %1057 = vmatpush1.msra.mxu0 0.0
    %1058 = vmatprep.subr.mxu0 0.0
    %1059 = vmatpush1.msra.mxu0 0.0
    %1060 = vmatprep.subr.mxu0 0.0
    %1061 = vmatpush1.msra.mxu0 0.0
    %1062 = vmatprep.subr.mxu0 0.0
    %1063 = vmatpush1.msra.mxu0 0.0
    %1064 = vmatprep.subr.mxu0 0.0
    %1065 = vmatpush1.msra.mxu0 0.0
    %1066 = vmatprep.subr.mxu0 0.0
    %1067 = vmatpush1.msra.mxu0 0.0
    %1068 = vmatprep.subr.mxu0 0.0
    %1069 = vmatpush1.msra.mxu0 0.0
    %1070 = vmatprep.subr.mxu0 0.0
    %1071 = vmatpush1.msra.mxu0 0.0
    %1072 = vmatprep.subr.mxu0 0.0
    %1073 = vmatpush1.msra.mxu0 0.0
    %1074 = vmatprep.subr.mxu0 0.0
    %1075 = vmatpush1.msra.mxu0 0.0
    %1076 = vmatprep.subr.mxu0 0.0
    %1077 = vmatpush1.msra.mxu0 0.0
    %1078 = vmatprep.subr.mxu0 0.0
    %1079 = vmatpush1.msra.mxu0 0.0
    %1080 = vmatprep.subr.mxu0 0.0
    %1081 = vmatpush1.msra.mxu0 0.0
    %1082 = vmatprep.subr.mxu0 0.0
    %1083 = vmatpush1.msra.mxu0 0.0
    %1084 = vmatprep.subr.mxu0 0.0
    %1085 = vmatpush1.msra.mxu0 %v1044
    %1086 = vmatprep.subr.mxu0 0.0
    %1087 = vmatpush2.msra.mxu0 0.0
    %1088 = vmatprep.subr.mxu0 0.0
    %1089 = vmatpush2.msra.mxu0 0.0
    %1090 = vmatprep.subr.mxu0 0.0
    %1091 = vmatpush2.msra.mxu0 0.0
    %1092 = vmatprep.subr.mxu0 0.0
    %1093 = vmatpush2.msra.mxu0 0.0
    %1094 = vmatprep.subr.mxu0 0.0
    %1095 = vmatpush2.msra.mxu0 0.0
    %1096 = vmatprep.subr.mxu0 0.0
    %1097 = vmatpush2.msra.mxu0 0.0
    %1098 = vmatprep.subr.mxu0 0.0
    %1099 = vmatpush2.msra.mxu0 0.0
    %1100 = vmatprep.subr.mxu0 0.0
    %1101 = vmatpush2.msra.mxu0 0.0
    %1102 = vmatprep.subr.mxu0 0.0
    %1103 = vmatpush2.msra.mxu0 0.0
    %1104 = vmatprep.subr.mxu0 0.0
    %1105 = vmatpush2.msra.mxu0 0.0
    %1106 = vmatprep.subr.mxu0 0.0
    %1107 = vmatpush2.msra.mxu0 0.0
    %1108 = vmatprep.subr.mxu0 0.0
    %1109 = vmatpush2.msra.mxu0 0.0
    %1110 = vmatprep.subr.mxu0 0.0
    %1111 = vmatpush2.msra.mxu0 0.0
    %1112 = vmatprep.subr.mxu0 0.0
    %1113 = vmatpush2.msra.mxu0 0.0
    %1114 = vmatprep.subr.mxu0 0.0
    %1115 = vmatpush2.msra.mxu0 0.0
    %1116 = vmatprep.subr.mxu0 0.0
    %1117 = vmatpush2.msra.mxu0 0.0
    %1118 = vmatprep.mubr.f32.mxu0 0.0
    %1119 = vmatmul.mubr.f32.gmra.mxu0 %v1049
    %v1120 = vpop.f32.mrf.mxu0
    %v1121 = vadd.f32 0.0, %v1120
    %v1122 = vpop.f32.mrf.mxu0
    %1123 = vmatprep.mubr.f32.mxu0 0.0
    %1124 = vmatmul.mubr.f32.gmra.mxu0 %v1052
    %v1125 = vpop.f32.mrf.mxu0
    %v1126 = vadd.f32 0.0, %v1125
    %v1127 = vpop.f32.mrf.mxu0
    %1128 = vdwg.mxu0
    %v1130 = vsel %vm242, %v862, 0
    %v1133 = vsel %vm242, %v867, 0
    %1135 = vmatprep.subr.mxu0 0.0
    %1136 = vmatpush1.msra.mxu0 0.0
    %1137 = vmatprep.subr.mxu0 0.0
    %1138 = vmatpush1.msra.mxu0 0.0
    %1139 = vmatprep.subr.mxu0 0.0
    %1140 = vmatpush1.msra.mxu0 0.0
    %1141 = vmatprep.subr.mxu0 0.0
    %1142 = vmatpush1.msra.mxu0 0.0
    %1143 = vmatprep.subr.mxu0 0.0
    %1144 = vmatpush1.msra.mxu0 0.0
    %1145 = vmatprep.subr.mxu0 0.0
    %1146 = vmatpush1.msra.mxu0 0.0
    %1147 = vmatprep.subr.mxu0 0.0
    %1148 = vmatpush1.msra.mxu0 0.0
    %1149 = vmatprep.subr.mxu0 0.0
    %1150 = vmatpush1.msra.mxu0 0.0
    %1151 = vmatprep.subr.mxu0 0.0
    %1152 = vmatpush1.msra.mxu0 0.0
    %1153 = vmatprep.subr.mxu0 0.0
    %1154 = vmatpush1.msra.mxu0 0.0
    %1155 = vmatprep.subr.mxu0 0.0
    %1156 = vmatpush1.msra.mxu0 0.0
    %1157 = vmatprep.subr.mxu0 0.0
    %1158 = vmatpush1.msra.mxu0 0.0
    %1159 = vmatprep.subr.mxu0 0.0
    %1160 = vmatpush1.msra.mxu0 0.0
    %1161 = vmatprep.subr.mxu0 0.0
    %1162 = vmatpush1.msra.mxu0 0.0
    %1163 = vmatprep.subr.mxu0 0.0
    %1164 = vmatpush1.msra.mxu0 0.0
    %1165 = vmatprep.subr.mxu0 0.0
    %1166 = vmatpush1.msra.mxu0 %v1045
    %1167 = vmatprep.subr.mxu0 0.0
    %1168 = vmatpush2.msra.mxu0 0.0
    %1169 = vmatprep.subr.mxu0 0.0
    %1170 = vmatpush2.msra.mxu0 0.0
    %1171 = vmatprep.subr.mxu0 0.0
    %1172 = vmatpush2.msra.mxu0 0.0
    %1173 = vmatprep.subr.mxu0 0.0
    %1174 = vmatpush2.msra.mxu0 0.0
    %1175 = vmatprep.subr.mxu0 0.0
    %1176 = vmatpush2.msra.mxu0 0.0
    %1177 = vmatprep.subr.mxu0 0.0
    %1178 = vmatpush2.msra.mxu0 0.0
    %1179 = vmatprep.subr.mxu0 0.0
    %1180 = vmatpush2.msra.mxu0 0.0
    %1181 = vmatprep.subr.mxu0 0.0
    %1182 = vmatpush2.msra.mxu0 0.0
    %1183 = vmatprep.subr.mxu0 0.0
    %1184 = vmatpush2.msra.mxu0 0.0
    %1185 = vmatprep.subr.mxu0 0.0
    %1186 = vmatpush2.msra.mxu0 0.0
    %1187 = vmatprep.subr.mxu0 0.0
    %1188 = vmatpush2.msra.mxu0 0.0
    %1189 = vmatprep.subr.mxu0 0.0
    %1190 = vmatpush2.msra.mxu0 0.0
    %1191 = vmatprep.subr.mxu0 0.0
    %1192 = vmatpush2.msra.mxu0 0.0
    %1193 = vmatprep.subr.mxu0 0.0
    %1194 = vmatpush2.msra.mxu0 0.0
    %1195 = vmatprep.subr.mxu0 0.0
    %1196 = vmatpush2.msra.mxu0 0.0
    %1197 = vmatprep.subr.mxu0 0.0
    %1198 = vmatpush2.msra.mxu0 0.0
    %1199 = vmatprep.mubr.f32.mxu0 0.0
    %1200 = vmatmul.mubr.f32.gmra.mxu0 %v1130
    %v1201 = vpop.f32.mrf.mxu0
    %v1202 = vadd.f32 0.0, %v1201
    %v1203 = vpop.f32.mrf.mxu0
    %1204 = vmatprep.mubr.f32.mxu0 0.0
    %1205 = vmatmul.mubr.f32.gmra.mxu0 %v1133
    %v1206 = vpop.f32.mrf.mxu0
    %v1207 = vadd.f32 0.0, %v1206
    %v1208 = vpop.f32.mrf.mxu0
    %1209 = vdwg.mxu0
    %v1211 = vsel %vm242, %v949, 0
    %v1214 = vsel %vm242, %v954, 0
    %1216 = vmatprep.subr.mxu0 0.0
    %1217 = vmatpush1.msra.mxu0 0.0
    %1218 = vmatprep.subr.mxu0 0.0
    %1219 = vmatpush1.msra.mxu0 0.0
    %1220 = vmatprep.subr.mxu0 0.0
    %1221 = vmatpush1.msra.mxu0 0.0
    %1222 = vmatprep.subr.mxu0 0.0
    %1223 = vmatpush1.msra.mxu0 0.0
    %1224 = vmatprep.subr.mxu0 0.0
    %1225 = vmatpush1.msra.mxu0 0.0
    %1226 = vmatprep.subr.mxu0 0.0
    %1227 = vmatpush1.msra.mxu0 0.0
    %1228 = vmatprep.subr.mxu0 0.0
    %1229 = vmatpush1.msra.mxu0 0.0
    %1230 = vmatprep.subr.mxu0 0.0
    %1231 = vmatpush1.msra.mxu0 0.0
    %1232 = vmatprep.subr.mxu0 0.0
    %1233 = vmatpush1.msra.mxu0 0.0
    %1234 = vmatprep.subr.mxu0 0.0
    %1235 = vmatpush1.msra.mxu0 0.0
    %1236 = vmatprep.subr.mxu0 0.0
    %1237 = vmatpush1.msra.mxu0 0.0
    %1238 = vmatprep.subr.mxu0 0.0
    %1239 = vmatpush1.msra.mxu0 0.0
    %1240 = vmatprep.subr.mxu0 0.0
    %1241 = vmatpush1.msra.mxu0 0.0
    %1242 = vmatprep.subr.mxu0 0.0
    %1243 = vmatpush1.msra.mxu0 0.0
    %1244 = vmatprep.subr.mxu0 0.0
    %1245 = vmatpush1.msra.mxu0 0.0
    %1246 = vmatprep.subr.mxu0 0.0
    %1247 = vmatpush1.msra.mxu0 %v1046
    %1248 = vmatprep.subr.mxu0 0.0
    %1249 = vmatpush2.msra.mxu0 0.0
    %1250 = vmatprep.subr.mxu0 0.0
    %1251 = vmatpush2.msra.mxu0 0.0
    %1252 = vmatprep.subr.mxu0 0.0
    %1253 = vmatpush2.msra.mxu0 0.0
    %1254 = vmatprep.subr.mxu0 0.0
    %1255 = vmatpush2.msra.mxu0 0.0
    %1256 = vmatprep.subr.mxu0 0.0
    %1257 = vmatpush2.msra.mxu0 0.0
    %1258 = vmatprep.subr.mxu0 0.0
    %1259 = vmatpush2.msra.mxu0 0.0
    %1260 = vmatprep.subr.mxu0 0.0
    %1261 = vmatpush2.msra.mxu0 0.0
    %1262 = vmatprep.subr.mxu0 0.0
    %1263 = vmatpush2.msra.mxu0 0.0
    %1264 = vmatprep.subr.mxu0 0.0
    %1265 = vmatpush2.msra.mxu0 0.0
    %1266 = vmatprep.subr.mxu0 0.0
    %1267 = vmatpush2.msra.mxu0 0.0
    %1268 = vmatprep.subr.mxu0 0.0
    %1269 = vmatpush2.msra.mxu0 0.0
    %1270 = vmatprep.subr.mxu0 0.0
    %1271 = vmatpush2.msra.mxu0 0.0
    %1272 = vmatprep.subr.mxu0 0.0
    %1273 = vmatpush2.msra.mxu0 0.0
    %1274 = vmatprep.subr.mxu0 0.0
    %1275 = vmatpush2.msra.mxu0 0.0
    %1276 = vmatprep.subr.mxu0 0.0
    %1277 = vmatpush2.msra.mxu0 0.0
    %1278 = vmatprep.subr.mxu0 0.0
    %1279 = vmatpush2.msra.mxu0 0.0
    %1280 = vmatprep.mubr.f32.mxu0 0.0
    %1281 = vmatmul.mubr.f32.gmra.mxu0 %v1211
    %v1282 = vpop.f32.mrf.mxu0
    %v1283 = vadd.f32 0.0, %v1282
    %v1284 = vpop.f32.mrf.mxu0
    %1285 = vmatprep.mubr.f32.mxu0 0.0
    %1286 = vmatmul.mubr.f32.gmra.mxu0 %v1214
    %v1287 = vpop.f32.mrf.mxu0
    %v1288 = vadd.f32 0.0, %v1287
    %v1289 = vpop.f32.mrf.mxu0
    %1290 = vdwg.mxu0
    %v1292 = vsel %vm242, %v1036, 0
    %v1295 = vsel %vm242, %v1041, 0
    %1297 = vmatprep.subr.mxu0 0.0
    %1298 = vmatpush1.msra.mxu0 0.0
    %1299 = vmatprep.subr.mxu0 0.0
    %1300 = vmatpush1.msra.mxu0 0.0
    %1301 = vmatprep.subr.mxu0 0.0
    %1302 = vmatpush1.msra.mxu0 0.0
    %1303 = vmatprep.subr.mxu0 0.0
    %1304 = vmatpush1.msra.mxu0 0.0
    %1305 = vmatprep.subr.mxu0 0.0
    %1306 = vmatpush1.msra.mxu0 0.0
    %1307 = vmatprep.subr.mxu0 0.0
    %1308 = vmatpush1.msra.mxu0 0.0
    %1309 = vmatprep.subr.mxu0 0.0
    %1310 = vmatpush1.msra.mxu0 0.0
    %1311 = vmatprep.subr.mxu0 0.0
    %1312 = vmatpush1.msra.mxu0 0.0
    %1313 = vmatprep.subr.mxu0 0.0
    %1314 = vmatpush1.msra.mxu0 0.0
    %1315 = vmatprep.subr.mxu0 0.0
    %1316 = vmatpush1.msra.mxu0 0.0
    %1317 = vmatprep.subr.mxu0 0.0
    %1318 = vmatpush1.msra.mxu0 0.0
    %1319 = vmatprep.subr.mxu0 0.0
    %1320 = vmatpush1.msra.mxu0 0.0
    %1321 = vmatprep.subr.mxu0 0.0
    %1322 = vmatpush1.msra.mxu0 0.0
    %1323 = vmatprep.subr.mxu0 0.0
    %1324 = vmatpush1.msra.mxu0 0.0
    %1325 = vmatprep.subr.mxu0 0.0
    %1326 = vmatpush1.msra.mxu0 0.0
    %1327 = vmatprep.subr.mxu0 0.0
    %1328 = vmatpush1.msra.mxu0 %v1047
    %1329 = vmatprep.subr.mxu0 0.0
    %1330 = vmatpush2.msra.mxu0 0.0
    %1331 = vmatprep.subr.mxu0 0.0
    %1332 = vmatpush2.msra.mxu0 0.0
    %1333 = vmatprep.subr.mxu0 0.0
    %1334 = vmatpush2.msra.mxu0 0.0
    %1335 = vmatprep.subr.mxu0 0.0
    %1336 = vmatpush2.msra.mxu0 0.0
    %1337 = vmatprep.subr.mxu0 0.0
    %1338 = vmatpush2.msra.mxu0 0.0
    %1339 = vmatprep.subr.mxu0 0.0
    %1340 = vmatpush2.msra.mxu0 0.0
    %1341 = vmatprep.subr.mxu0 0.0
    %1342 = vmatpush2.msra.mxu0 0.0
    %1343 = vmatprep.subr.mxu0 0.0
    %1344 = vmatpush2.msra.mxu0 0.0
    %1345 = vmatprep.subr.mxu0 0.0
    %1346 = vmatpush2.msra.mxu0 0.0
    %1347 = vmatprep.subr.mxu0 0.0
    %1348 = vmatpush2.msra.mxu0 0.0
    %1349 = vmatprep.subr.mxu0 0.0
    %1350 = vmatpush2.msra.mxu0 0.0
    %1351 = vmatprep.subr.mxu0 0.0
    %1352 = vmatpush2.msra.mxu0 0.0
    %1353 = vmatprep.subr.mxu0 0.0
    %1354 = vmatpush2.msra.mxu0 0.0
    %1355 = vmatprep.subr.mxu0 0.0
    %1356 = vmatpush2.msra.mxu0 0.0
    %1357 = vmatprep.subr.mxu0 0.0
    %1358 = vmatpush2.msra.mxu0 0.0
    %1359 = vmatprep.subr.mxu0 0.0
    %1360 = vmatpush2.msra.mxu0 0.0
    %1361 = vmatprep.mubr.f32.mxu0 0.0
    %1362 = vmatmul.mubr.f32.gmra.mxu0 %v1292
    %v1363 = vpop.f32.mrf.mxu0
    %v1364 = vadd.f32 0.0, %v1363
    %v1365 = vpop.f32.mrf.mxu0
    %1366 = vmatprep.mubr.f32.mxu0 0.0
    %1367 = vmatmul.mubr.f32.gmra.mxu0 %v1295
    %v1368 = vpop.f32.mrf.mxu0
    %v1369 = vadd.f32 0.0, %v1368
    %v1370 = vpop.f32.mrf.mxu0
    %1371 = vdwg.mxu0
    %v1372 = vadd.f32 %v1121, %v1202
    %v1373 = vadd.f32 %v1126, %v1207
    %v1374 = vadd.f32 %v1372, %v1283
    %v1375 = vadd.f32 %v1373, %v1288
    %v1376 = vadd.f32 %v1374, %v1364
    %v1377 = vadd.f32 %v1375, %v1369
    %v1378 = vlaneseq
    %v1379 = vshrl.u32 %v1378, 7
    %v1380 = vsub.s32 0, %v1379
    %v1381 = vrot.slane %v67, %v1380
    %v1382 = vadd.f32 %v1376, %v1381
    %v1383 = vadd.f32 %v1377, %v1381
    %v1384 = vadd.f32 %v61, %v1382
    %v1385 = vadd.f32 %v62, %v1383
    %v1386 = vsel %vm73, %v1384, 0.0
    %1387 = vadd.xlane.f32.xlu0 %v1386
    %v1388 = vpop.xlane.xlu0 %1387
    %v1389 = vsel %vm73, %v1385, 0.0
    %1390 = vadd.xlane.f32.xlu0 %v1389
    %v1391 = vpop.xlane.xlu0 %1390
    %v1392 = vmul.f32 %v1384, %v1384
    %v1393 = vmul.f32 %v1385, %v1385
    %v1394 = vsel %vm73, %v1392, 0.0
    %1395 = vadd.xlane.f32.xlu0 %v1394
    %v1396 = vpop.xlane.xlu0 %1395
    %v1397 = vsel %vm73, %v1393, 0.0
    %1398 = vadd.xlane.f32.xlu0 %v1397
    %v1399 = vpop.xlane.xlu0 %1398
    %v1400 = vmul.f32 %v1388, 0.03125
    %v1401 = vmul.f32 %v1391, 0.03125
    %v1402 = vmul.f32 %v1388, %v1400
    %v1403 = vmul.f32 %v1391, %v1401
    %v1404 = vsub.f32 %v1396, %v1402
    %v1405 = vsub.f32 %v1399, %v1403
    %v1406 = vmax.f32 %v1404, 0.0
    %v1407 = vmax.f32 %v1405, 0.0
    %v1408 = vmul.f32 %v1406, 0.032258064
    %v1409 = vmul.f32 %v1407, 0.032258064
    %v1410 = vrsqrt.pop %v1408
    %v1411 = vmul.f32 %v1408, %v1410
    %vm1412 = vcmp.eq.f32.partialorder %v1408, inf
    %v1413 = vsel %vm1412, %v1408, %v1411
    %vm1414 = vcmp.eq.f32.partialorder %v1408, 0.0
    %v1415 = vand.u32 %v1408, 2147483648
    %v1416 = vsel %vm1414, %v1415, %v1413
    %v1417 = vrsqrt.pop %v1409
    %v1418 = vmul.f32 %v1409, %v1417
    %vm1419 = vcmp.eq.f32.partialorder %v1409, inf
    %v1420 = vsel %vm1419, %v1409, %v1418
    %vm1421 = vcmp.eq.f32.partialorder %v1409, 0.0
    %v1422 = vand.u32 %v1409, 2147483648
    %v1423 = vsel %vm1421, %v1422, %v1420
    %v1424 = vsub.f32 %v1384, %v1400
    %v1425 = vsub.f32 %v1385, %v1401
    %v1426 = vlaneseq
    %v1427 = vshrl.u32 %v1426, 7
    %v1428 = vsub.s32 0, %v1427
    %v1429 = vrot.slane %v71, %v1428
    %v1430 = vmul.f32 %v1429, %v1424
    %v1431 = vmul.f32 %v1429, %v1425
    %v1432 = vadd.f32 %v1416, 1e-06
    %v1433 = vadd.f32 %v1423, 1e-06
    %v1434 = vrcp.pop %v1432
    %v1435 = vrcp.pop %v1433
    %v1436 = vmul.f32 %v1430, %v1434
    %v1437 = vmul.f32 %v1431, %v1435
    %v1438 = vlaneseq
    %v1439 = vshrl.u32 %v1438, 7
    %v1440 = vsub.s32 0, %v1439
    %v1441 = vrot.slane %v72, %v1440
    %v1442 = vadd.f32 %v1436, %v1441
    %v1443 = vadd.f32 %v1437, %v1441
    %v1444 = vld [vmem:[%s5] sm:$0xff]
    %v1445 = vld [vmem:[%s5 + $0x8] sm:$0xff]
    %v1446 = vld [vmem:[%s5 + $0x10] sm:$0xff]
    %v1447 = vld [vmem:[%s5 + $0x18] sm:$0xff]
    %v1448 = vld [vmem:[%s6] sm:$0x1]
    %v1450 = vlaneseq
    %v1451 = vshrl.u32 %v1450, 7
    %v1452 = vsub.s32 0, %v1451
    %v1453 = vrot.slane %v1448, %v1452
    %v1456 = vsel %vm73, %v1442, 0
    %v1459 = vsel %vm73, %v1443, 0
    %1461 = vmatprep.subr.mxu0 0.0
    %1462 = vmatpush1.msra.mxu0 0.0
    %1463 = vmatprep.subr.mxu0 0.0
    %1464 = vmatpush1.msra.mxu0 0.0
    %1465 = vmatprep.subr.mxu0 0.0
    %1466 = vmatpush1.msra.mxu0 0.0
    %1467 = vmatprep.subr.mxu0 0.0
    %1468 = vmatpush1.msra.mxu0 0.0
    %1469 = vmatprep.subr.mxu0 0.0
    %1470 = vmatpush1.msra.mxu0 0.0
    %1471 = vmatprep.subr.mxu0 0.0
    %1472 = vmatpush1.msra.mxu0 0.0
    %1473 = vmatprep.subr.mxu0 0.0
    %1474 = vmatpush1.msra.mxu0 0.0
    %1475 = vmatprep.subr.mxu0 0.0
    %1476 = vmatpush1.msra.mxu0 0.0
    %1477 = vmatprep.subr.mxu0 0.0
    %1478 = vmatpush1.msra.mxu0 0.0
    %1479 = vmatprep.subr.mxu0 0.0
    %1480 = vmatpush1.msra.mxu0 0.0
    %1481 = vmatprep.subr.mxu0 0.0
    %1482 = vmatpush1.msra.mxu0 0.0
    %1483 = vmatprep.subr.mxu0 0.0
    %1484 = vmatpush1.msra.mxu0 0.0
    %1485 = vmatprep.subr.mxu0 0.0
    %1486 = vmatpush1.msra.mxu0 %v1447
    %1487 = vmatprep.subr.mxu0 0.0
    %1488 = vmatpush1.msra.mxu0 %v1446
    %1489 = vmatprep.subr.mxu0 0.0
    %1490 = vmatpush1.msra.mxu0 %v1445
    %1491 = vmatprep.subr.mxu0 0.0
    %1492 = vmatpush1.msra.mxu0 %v1444
    %1493 = vmatprep.subr.mxu0 0.0
    %1494 = vmatpush2.msra.mxu0 0.0
    %1495 = vmatprep.subr.mxu0 0.0
    %1496 = vmatpush2.msra.mxu0 0.0
    %1497 = vmatprep.subr.mxu0 0.0
    %1498 = vmatpush2.msra.mxu0 0.0
    %1499 = vmatprep.subr.mxu0 0.0
    %1500 = vmatpush2.msra.mxu0 0.0
    %1501 = vmatprep.subr.mxu0 0.0
    %1502 = vmatpush2.msra.mxu0 0.0
    %1503 = vmatprep.subr.mxu0 0.0
    %1504 = vmatpush2.msra.mxu0 0.0
    %1505 = vmatprep.subr.mxu0 0.0
    %1506 = vmatpush2.msra.mxu0 0.0
    %1507 = vmatprep.subr.mxu0 0.0
    %1508 = vmatpush2.msra.mxu0 0.0
    %1509 = vmatprep.subr.mxu0 0.0
    %1510 = vmatpush2.msra.mxu0 0.0
    %1511 = vmatprep.subr.mxu0 0.0
    %1512 = vmatpush2.msra.mxu0 0.0
    %1513 = vmatprep.subr.mxu0 0.0
    %1514 = vmatpush2.msra.mxu0 0.0
    %1515 = vmatprep.subr.mxu0 0.0
    %1516 = vmatpush2.msra.mxu0 0.0
    %1517 = vmatprep.subr.mxu0 0.0
    %1518 = vmatpush2.msra.mxu0 0.0
    %1519 = vmatprep.subr.mxu0 0.0
    %1520 = vmatpush2.msra.mxu0 0.0
    %1521 = vmatprep.subr.mxu0 0.0
    %1522 = vmatpush2.msra.mxu0 0.0
    %1523 = vmatprep.subr.mxu0 0.0
    %1524 = vmatpush2.msra.mxu0 0.0
    %1525 = vmatprep.mubr.f32.mxu0 0.0
    %1526 = vmatmul.mubr.f32.gmra.mxu0 %v1456
    %v1527 = vpop.f32.mrf.mxu0
    %v1528 = vadd.f32 %v1453, %v1527
    %v1529 = vpop.f32.mrf.mxu0
    %1530 = vmatprep.mubr.f32.mxu0 0.0
    %1531 = vmatmul.mubr.f32.gmra.mxu0 %v1459
    %v1532 = vpop.f32.mrf.mxu0
    %v1533 = vadd.f32 %v1453, %v1532
    %v1534 = vpop.f32.mrf.mxu0
    %1535 = vdwg.mxu0
    %v1536 = vmax.f32 %v1528, 0.0
    %v1537 = vmax.f32 %v1533, 0.0
    %v1538 = vld [vmem:[%s7] sm:$0xff]
    %v1539 = vld [vmem:[%s7 + $0x8] sm:$0xff]
    %v1540 = vld [vmem:[%s7 + $0x10] sm:$0xff]
    %v1541 = vld [vmem:[%s7 + $0x18] sm:$0xff]
    %v1542 = vld [vmem:[%s7 + $0x20] sm:$0xff]
    %v1543 = vld [vmem:[%s7 + $0x28] sm:$0xff]
    %v1544 = vld [vmem:[%s7 + $0x30] sm:$0xff]
    %v1545 = vld [vmem:[%s7 + $0x38] sm:$0xff]
    %v1546 = vlaneseq
    %v1547 = vshrl.u32 %v1546, 7
    %v1548 = vsub.s32 0, %v1547
    %v1549 = vrot.slane %v68, %v1548
    %vm1550 = vcmask 523264
    %v1552 = vsel %vm1550, %v1536, 0
    %v1555 = vsel %vm1550, %v1537, 0
    %1557 = vmatprep.subr.mxu0 0.0
    %1558 = vmatpush1.msra.mxu0 0.0
    %1559 = vmatprep.subr.mxu0 0.0
    %1560 = vmatpush1.msra.mxu0 0.0
    %1561 = vmatprep.subr.mxu0 0.0
    %1562 = vmatpush1.msra.mxu0 0.0
    %1563 = vmatprep.subr.mxu0 0.0
    %1564 = vmatpush1.msra.mxu0 0.0
    %1565 = vmatprep.subr.mxu0 0.0
    %1566 = vmatpush1.msra.mxu0 0.0
    %1567 = vmatprep.subr.mxu0 0.0
    %1568 = vmatpush1.msra.mxu0 0.0
    %1569 = vmatprep.subr.mxu0 0.0
    %1570 = vmatpush1.msra.mxu0 0.0
    %1571 = vmatprep.subr.mxu0 0.0
    %1572 = vmatpush1.msra.mxu0 0.0
    %1573 = vmatprep.subr.mxu0 0.0
    %1574 = vmatpush1.msra.mxu0 %v1545
    %1575 = vmatprep.subr.mxu0 0.0
    %1576 = vmatpush1.msra.mxu0 %v1544
    %1577 = vmatprep.subr.mxu0 0.0
    %1578 = vmatpush1.msra.mxu0 %v1543
    %1579 = vmatprep.subr.mxu0 0.0
    %1580 = vmatpush1.msra.mxu0 %v1542
    %1581 = vmatprep.subr.mxu0 0.0
    %1582 = vmatpush1.msra.mxu0 %v1541
    %1583 = vmatprep.subr.mxu0 0.0
    %1584 = vmatpush1.msra.mxu0 %v1540
    %1585 = vmatprep.subr.mxu0 0.0
    %1586 = vmatpush1.msra.mxu0 %v1539
    %1587 = vmatprep.subr.mxu0 0.0
    %1588 = vmatpush1.msra.mxu0 %v1538
    %1589 = vmatprep.subr.mxu0 0.0
    %1590 = vmatpush2.msra.mxu0 0.0
    %1591 = vmatprep.subr.mxu0 0.0
    %1592 = vmatpush2.msra.mxu0 0.0
    %1593 = vmatprep.subr.mxu0 0.0
    %1594 = vmatpush2.msra.mxu0 0.0
    %1595 = vmatprep.subr.mxu0 0.0
    %1596 = vmatpush2.msra.mxu0 0.0
    %1597 = vmatprep.subr.mxu0 0.0
    %1598 = vmatpush2.msra.mxu0 0.0
    %1599 = vmatprep.subr.mxu0 0.0
    %1600 = vmatpush2.msra.mxu0 0.0
    %1601 = vmatprep.subr.mxu0 0.0
    %1602 = vmatpush2.msra.mxu0 0.0
    %1603 = vmatprep.subr.mxu0 0.0
    %1604 = vmatpush2.msra.mxu0 0.0
    %1605 = vmatprep.subr.mxu0 0.0
    %1606 = vmatpush2.msra.mxu0 0.0
    %1607 = vmatprep.subr.mxu0 0.0
    %1608 = vmatpush2.msra.mxu0 0.0
    %1609 = vmatprep.subr.mxu0 0.0
    %1610 = vmatpush2.msra.mxu0 0.0
    %1611 = vmatprep.subr.mxu0 0.0
    %1612 = vmatpush2.msra.mxu0 0.0
    %1613 = vmatprep.subr.mxu0 0.0
    %1614 = vmatpush2.msra.mxu0 0.0
    %1615 = vmatprep.subr.mxu0 0.0
    %1616 = vmatpush2.msra.mxu0 0.0
    %1617 = vmatprep.subr.mxu0 0.0
    %1618 = vmatpush2.msra.mxu0 0.0
    %1619 = vmatprep.subr.mxu0 0.0
    %1620 = vmatpush2.msra.mxu0 0.0
    %1621 = vmatprep.mubr.f32.mxu0 0.0
    %1622 = vmatmul.mubr.f32.gmra.mxu0 %v1552
    %v1623 = vpop.f32.mrf.mxu0
    %v1624 = vadd.f32 %v1549, %v1623
    %v1625 = vpop.f32.mrf.mxu0
    %1626 = vmatprep.mubr.f32.mxu0 0.0
    %1627 = vmatmul.mubr.f32.gmra.mxu0 %v1555
    %v1628 = vpop.f32.mrf.mxu0
    %v1629 = vadd.f32 %v1549, %v1628
    %v1630 = vpop.f32.mrf.mxu0
    %1631 = vdwg.mxu0
    %v1632 = vadd.f32 %v1384, %v1624
    %v1633 = vadd.f32 %v1385, %v1629
    %1634 = vst.msk [vmem:[#allocation7] sm:$0xff] %vm73, %v1632
    %1635 = vst.msk [vmem:[#allocation7 + $0x8] sm:$0xff] %vm73, %v1633
    // Predicated region
    $region46: #{tpu_custom_call.1} parent=1 // pred_check
      _
    $region47: #{tpu_custom_call.1} parent=1 // pred_check_branch
      %1637 = sbr.rel (0) target = $region49
    $region48: #{tpu_custom_call.1} parent=1 // pred_region
      %s1639 = ssub.s32 256, 256
      %1640 = vsyncadd [#allocation4], %s1639
      %s1641 = sshll.u32 [#allocation7], 4
      %s1642 = int_to_ptr.vmem [resolvable:$true] %s1641
      %1647 = dma.vmem_to_hbm [thread:$0]  %s1642, 256, %s9, [#allocation4], 128, 128, 8
    $region49: #{tpu_custom_call.1} parent=1 // pred_fallthru
      _
    // Predicated region
    $region50: #{tpu_custom_call.1} parent=1 // pred_check
      _
    $region51: #{tpu_custom_call.1} parent=1 // pred_check_branch
      %1649 = sbr.rel (0) target = $region53
    $region52: #{tpu_custom_call.1} parent=1 // pred_region
      %1650 = dma.done [#allocation4], 256
    $region53: #{tpu_custom_call.1} parent=1 // pred_fallthru
      _
    %1651 = vsyncpa [#allocation3], 1
    %1652 = vsyncpa [#allocation6], 1
    %1653 = vsyncpa [#allocation4], 1

</llo_original>
